<compile_context>
chip_gen: v6e
topology: v6e:2x2x1
jax: 0.10.0
libtpu: 0.0.40
codegen_flags: <defaults>
</compile_context>

<pallas_src>
import functools

import jax
import jax.numpy as jnp
from jax import lax
from jax.experimental import pallas as pl
from jax.experimental.pallas import tpu as pltpu

BN_EPS = 1e-5


# ----------------------------------------------------------------------------
# Pallas kernel
# ----------------------------------------------------------------------------
def _unet_iner_con_upc3_kernel(
    f_dir_ref,       # (1, c_dir1, HWt)      f32
    f_iner_ref,      # (1, c_iner1, HWt)     f32
    masks_ref,       # (3, 3, 1, HWt)        f32 border masks for dh,dw in {-1,0,1}
    cv12_w_ref, cv12_b_ref,        # (2*c_, c_iner1) bf16, (2*c_, 1) f32
    m1_w_ref, m1_b_ref,            # (n, c_, c_) bf16,     (n, c_, 1) f32
    m2_w_ref, m2_b_ref,            # (n, c_, 9*c_) bf16,   (n, c_, 1) f32
    cv3_w_ref, cv3_b_ref,          # (c_iner2, 2*c_) bf16, (c_iner2, 1) f32
    up_w_ref, up_b_ref,            # (4, c2, 4*cc1) bf16,  (c2, 1) f32
    out_ref,         # (1, 4, c2, HWt); 4 = output parity planes (oh%2, ow%2)
    ycat_ref,        # scratch (2*c_, HWt)   bf16
    f1_ref,          # scratch (cc1, HWt)    f32
    m2taps_ref,      # scratch (9*c_, HWt)   bf16
    uptaps_ref,      # scratch (4*cc1, HWt)  bf16
    *, W, n_iner):
  f32 = jnp.float32
  bf16 = jnp.bfloat16
  c_dir1 = f_dir_ref.shape[1]
  c_ = cv12_w_ref.shape[0] // 2
  cc1 = f1_ref.shape[0]

  def silu(v):                     # sigmoid via EUP exp + approx reciprocal
    return v * pl.reciprocal(1.0 + jnp.exp(-v), approx=True)

  def shifted(x, dh, dw):
    # y[:, e*HW + h*W + w] = x[:, e*HW + (h+dh)*W + (w+dw)], 0 outside image.
    # jnp.roll(x, -s) (static shift) lowers to a lane rotate + select; any
    # wrap/batch-boundary contamination lands only on masked positions.
    s = dh * W + dw
    y = x if s == 0 else jnp.roll(x, -s, axis=1)
    if dh == 0 and dw == 0:
      return y
    return y * masks_ref[dh + 1, dw + 1]

  # ---------------- C3: cv1 + cv2 fused into one dot ----------------
  x_in = f_iner_ref[0].astype(bf16)                      # (c_iner1, HWt)
  y12 = silu(jnp.dot(cv12_w_ref[...], x_in, preferred_element_type=f32)
             + cv12_b_ref[...])                          # (2*c_, HWt) f32
  y1 = y12[:c_]
  y2 = y12[c_:]

  # -------- Bottleneck(s): 1x1, then 3x3 with its 9 taps K-stacked --------
  for i in range(n_iner):
    t = silu(jnp.dot(m1_w_ref[i], y1.astype(bf16), preferred_element_type=f32)
             + m1_b_ref[i])                              # (c_, HWt)
    for kh in range(3):
      for kw in range(3):
        m2taps_ref[pl.ds((kh * 3 + kw) * c_, c_), :] = (
            shifted(t, kh - 1, kw - 1).astype(bf16))
    y1 = y1 + silu(
        jnp.dot(m2_w_ref[i], m2taps_ref[...], preferred_element_type=f32)
        + m2_b_ref[i])

  # -------- cv3 on concat([y1, y2]) as a single K=2*c_ dot --------
  ycat_ref[pl.ds(0, c_), :] = y1.astype(bf16)
  ycat_ref[pl.ds(c_, c_), :] = y2.astype(bf16)
  y_c3 = silu(jnp.dot(cv3_w_ref[...], ycat_ref[...], preferred_element_type=f32)
              + cv3_b_ref[...])                          # (c_iner2, HWt)

  # -- concat([f_dir, y_c3]) -> ConvTranspose2d(4, s=2, p=1) + BN + SiLU ----
  # Per output parity (a, b) = (oh%2, ow%2): oh = 2r+a only uses taps kh with
  # kh % 2 == (a+1) % 2 and input row r + (a+1-kh)//2.  The 4 contributing
  # taps (dir + iner channels) are K-stacked into one (c2, 4*cc1) dot.
  f1_ref[pl.ds(0, c_dir1), :] = f_dir_ref[0]
  f1_ref[pl.ds(c_dir1, cc1 - c_dir1), :] = y_c3
  f1 = f1_ref[...]
  up_b = up_b_ref[...]

  shift_cache = {}
  def f1_shift(dh, dw):            # each shifted plane computed once, bf16
    if (dh, dw) not in shift_cache:
      shift_cache[(dh, dw)] = shifted(f1, dh, dw).astype(bf16)
    return shift_cache[(dh, dw)]

  for a in (0, 1):
    khs = (1, 3) if a == 0 else (0, 2)
    for b in (0, 1):
      kws = (1, 3) if b == 0 else (0, 2)
      j = 0
      for kh in khs:
        dh = (a + 1 - kh) // 2
        for kw in kws:
          dw = (b + 1 - kw) // 2
          uptaps_ref[pl.ds(j * cc1, cc1), :] = f1_shift(dh, dw)
          j += 1
      acc = jnp.dot(up_w_ref[a * 2 + b], uptaps_ref[...],
                    preferred_element_type=f32)          # (c2, HWt)
      out_ref[0, a * 2 + b] = silu(acc + up_b).astype(out_ref.dtype)


# ----------------------------------------------------------------------------
# Wrapper: BN folding, weight re-layout / K-stacking, pallas_call, interleave
# ----------------------------------------------------------------------------
def _fold_bn(w, bn, out_axis=0, eps=BN_EPS):
  """Fold an eval-mode BatchNorm2d (conv has no bias) into weight + bias."""
  scale = bn["gamma"] / jnp.sqrt(bn["var"] + eps)
  bias = bn["beta"] - bn["mean"] * scale
  shp = [1] * w.ndim
  shp[out_axis] = -1
  return w * scale.reshape(shp), bias


def _prepare_kernel_operands(params, H, W):
  f32, bf16 = jnp.float32, jnp.bfloat16
  n_iner = int(params["n_iner"])

  cv1_w, cv1_b = _fold_bn(params["cv1_w"], params["cv1_bn"])
  cv2_w, cv2_b = _fold_bn(params["cv2_w"], params["cv2_bn"])
  cv3_w, cv3_b = _fold_bn(params["cv3_w"], params["cv3_bn"])
  up_w, up_b = _fold_bn(params["up_w"], params["up_bn"], out_axis=1)

  c_ = cv1_w.shape[0]
  c_iner2 = cv3_w.shape[0]
  c2 = up_w.shape[1]
  cc1 = up_w.shape[0]
  c_dir1 = cc1 - c_iner2

  # cv1 + cv2 fused along the output-channel axis.
  cv12_w = jnp.concatenate([cv1_w[:, :, 0, 0], cv2_w[:, :, 0, 0]], axis=0)
  cv12_b = jnp.concatenate([cv1_b, cv2_b], axis=0)[:, None]

  # Bottleneck weights; the 9 taps of the 3x3 conv stacked along K:
  # (c_out, c_in, 3, 3) -> (c_out, kh, kw, c_in) -> (c_out, 9*c_in).
  m1_w, m1_b, m2_w, m2_b = [], [], [], []
  for i in range(n_iner):
    bn1 = {k: v[i] for k, v in params["m1_bn"].items()}
    bn2 = {k: v[i] for k, v in params["m2_bn"].items()}
    w1, b1 = _fold_bn(params["m1_w"][i], bn1)
    w2, b2 = _fold_bn(params["m2_w"][i], bn2)
    m1_w.append(w1[:, :, 0, 0])
    m1_b.append(b1[:, None])
    m2_w.append(w2.transpose(0, 2, 3, 1).reshape(c_, 9 * c_))
    m2_b.append(b2[:, None])

  cv3_w2 = cv3_w[:, :, 0, 0]                     # (c_iner2, 2*c_)

  # Transposed-conv weights: per output parity (a,b) stack the 4 contributing
  # taps (dir + iner channels already concatenated) along K -> (c2, 4*cc1).
  w_oihw = up_w.transpose(1, 0, 2, 3)            # (c2, cc1, 4, 4)
  par_w = []
  for a in (0, 1):
    khs = (1, 3) if a == 0 else (0, 2)
    for b in (0, 1):
      kws = (1, 3) if b == 0 else (0, 2)
      par_w.append(jnp.concatenate(
          [w_oihw[:, :, kh, kw] for kh in khs for kw in kws], axis=1))
  up_w_stacked = jnp.stack(par_w)                # (4, c2, 4*cc1)

  # Border masks: masks[dh+1, dw+1, 0, h*W+w] = 1 iff (h+dh, w+dw) in-image.
  hh = jnp.arange(H)[:, None]
  ww = jnp.arange(W)[None, :]
  masks = jnp.stack([
      jnp.stack([
          ((hh + dh >= 0) & (hh + dh < H) & (ww + dw >= 0) & (ww + dw < W))
          .astype(f32).reshape(1, H * W)
          for dw in (-1, 0, 1)])
      for dh in (-1, 0, 1)])                     # (3, 3, 1, HW)

  ops = dict(
      masks=masks.astype(f32),
      cv12_w=cv12_w.astype(bf16), cv12_b=cv12_b.astype(f32),
      m1_w=jnp.stack(m1_w).astype(bf16), m1_b=jnp.stack(m1_b).astype(f32),
      m2_w=jnp.stack(m2_w).astype(bf16), m2_b=jnp.stack(m2_b).astype(f32),
      cv3_w=cv3_w2.astype(bf16), cv3_b=cv3_b[:, None].astype(f32),
      up_w=up_w_stacked.astype(bf16), up_b=up_b[:, None].astype(f32),
  )
  dims = dict(c_=c_, c2=c2, c_iner2=c_iner2, c_dir1=c_dir1, cc1=cc1,
              n_iner=n_iner)
  return ops, dims


def unet_iner_con_upc3(f_dir, f_iner, params, *, batch_tile=1):
  """Fused Pallas forward of UnetInerConUpC3 (eval-mode BatchNorm)."""
  B, c_dir1, H, W = f_dir.shape
  Bi, c_iner1, Hi, Wi = f_iner.shape
  assert (B, H, W) == (Bi, Hi, Wi)
  bt = batch_tile
  assert B % bt == 0
  G = B // bt
  HW = H * W
  HWt = bt * HW

  ops, dims = _prepare_kernel_operands(params, H, W)
  c_, c2, cc1, n_iner = dims["c_"], dims["c2"], dims["cc1"], dims["n_iner"]
  assert n_iner >= 1

  f32 = jnp.float32

  # Lane-dense layout: (grid, C, bt*H*W) so every matmul has N = bt*HW lanes.
  def to_lane_dense(x, C):
    return (x.reshape(G, bt, C, HW).transpose(0, 2, 1, 3)
            .reshape(G, C, HWt).astype(f32))

  f_dir_f = to_lane_dense(f_dir, c_dir1)
  f_iner_f = to_lane_dense(f_iner, c_iner1)
  masks = jnp.tile(ops["masks"], (1, 1, 1, bt))

  operands = [
      f_dir_f, f_iner_f, masks,
      ops["cv12_w"], ops["cv12_b"],
      ops["m1_w"], ops["m1_b"], ops["m2_w"], ops["m2_b"],
      ops["cv3_w"], ops["cv3_b"],
      ops["up_w"], ops["up_b"],
  ]

  def full_spec(a):                  # replicated across the batch grid
    return pl.BlockSpec(a.shape, lambda g, _nd=a.ndim: (0,) * _nd)

  in_specs = [
      pl.BlockSpec((1, c_dir1, HWt), lambda g: (g, 0, 0)),
      pl.BlockSpec((1, c_iner1, HWt), lambda g: (g, 0, 0)),
  ] + [full_spec(a) for a in operands[2:]]

  kernel = functools.partial(_unet_iner_con_upc3_kernel, W=W, n_iner=n_iner)

  out4 = pl.pallas_call(
      kernel,
      out_shape=jax.ShapeDtypeStruct((G, 4, c2, HWt), f32),
      grid_spec=pltpu.PrefetchScalarGridSpec(
          num_scalar_prefetch=0,
          grid=(G,),
          in_specs=in_specs,
          out_specs=pl.BlockSpec((1, 4, c2, HWt), lambda g: (g, 0, 0, 0)),
          scratch_shapes=[
              pltpu.VMEM((2 * c_, HWt), jnp.bfloat16),    # [y1; y2] for cv3
              pltpu.VMEM((cc1, HWt), jnp.float32),        # [f_dir; y_c3]
              pltpu.VMEM((9 * c_, HWt), jnp.bfloat16),    # 3x3 K-stacked taps
              pltpu.VMEM((4 * cc1, HWt), jnp.bfloat16),   # upconv K-stacked taps
          ]),
      compiler_params=pltpu.CompilerParams(
          dimension_semantics=("parallel",),
          vmem_limit_bytes=32 * 1024 * 1024,
      ),
  )(*operands)

  # Interleave the 4 output-parity planes back to (B, c2, 2H, 2W); the
  # kernel's stores stay lane-dense.
  out = out4.reshape(G, 2, 2, c2, bt, H, W)       # (g, a, b, c, e, r, q)
  out = out.transpose(0, 4, 3, 5, 1, 6, 2)        # (g, e, c, r, a, q, b)
  return out.reshape(B, c2, 2 * H, 2 * W)


# ----------------------------------------------------------------------------
# Deterministic parameter init (PyTorch weight layouts) and pure-JAX reference
# ----------------------------------------------------------------------------
def init_params(key, c_dir1, c2, c_iner1, c_iner2, n_iner=1):
  c_ = c_iner2 // 2                      # C3 hidden channels (e = 0.5)
  cc1 = c_dir1 + c_iner2
  keys = iter(jax.random.split(key, 64))

  def conv_w(shape):
    fan_in = shape[1] * shape[2] * shape[3]
    bound = 1.0 / float(fan_in) ** 0.5
    return jax.random.uniform(next(keys), shape, jnp.float32, -bound, bound)

  def bn(c):
    return dict(
        gamma=jax.random.uniform(next(keys), (c,), jnp.float32, 0.5, 1.5),
        beta=0.1 * jax.random.normal(next(keys), (c,), jnp.float32),
        mean=0.1 * jax.random.normal(next(keys), (c,), jnp.float32),
        var=jax.random.uniform(next(keys), (c,), jnp.float32, 0.5, 1.5),
    )

  def stack_bn(bns):
    return {k: jnp.stack([d[k] for d in bns]) for k in bns[0]}

  ub = 1.0 / float(c2 * 16) ** 0.5
  return dict(
      n_iner=n_iner,
      cv1_w=conv_w((c_, c_iner1, 1, 1)), cv1_bn=bn(c_),
      cv2_w=conv_w((c_, c_iner1, 1, 1)), cv2_bn=bn(c_),
      m1_w=jnp.stack([conv_w((c_, c_, 1, 1)) for _ in range(n_iner)]),
      m1_bn=stack_bn([bn(c_) for _ in range(n_iner)]),
      m2_w=jnp.stack([conv_w((c_, c_, 3, 3)) for _ in range(n_iner)]),
      m2_bn=stack_bn([bn(c_) for _ in range(n_iner)]),
      cv3_w=conv_w((c_iner2, 2 * c_, 1, 1)), cv3_bn=bn(c_iner2),
      # ConvTranspose2d weight layout: (c_in, c_out, kH, kW)
      up_w=jax.random.uniform(next(keys), (cc1, c2, 4, 4), jnp.float32, -ub, ub),
      up_bn=bn(c2),
  )


def unet_iner_con_upc3_ref(f_dir, f_iner, params, eps=BN_EPS):
  """Pure-JAX/XLA reference matching the PyTorch forward (eval-mode BN)."""
  prec = lax.Precision.HIGHEST

  def bn_silu(y, bn):
    scale = bn["gamma"] / jnp.sqrt(bn["var"] + eps)
    shift = bn["beta"] - bn["mean"] * scale
    y = y * scale.reshape(1, -1, 1, 1) + shift.reshape(1, -1, 1, 1)
    return y * jax.nn.sigmoid(y)

  def conv(x, w, pad=0):
    return lax.conv_general_dilated(
        x, w, (1, 1), [(pad, pad), (pad, pad)],
        dimension_numbers=("NCHW", "OIHW", "NCHW"), precision=prec)

  # C3 on the inner feature map
  y1 = bn_silu(conv(f_iner, params["cv1_w"]), params["cv1_bn"])
  y2 = bn_silu(conv(f_iner, params["cv2_w"]), params["cv2_bn"])
  for i in range(params["n_iner"]):
    bn1 = {k: v[i] for k, v in params["m1_bn"].items()}
    bn2 = {k: v[i] for k, v in params["m2_bn"].items()}
    u = bn_silu(conv(y1, params["m1_w"][i]), bn1)
    u = bn_silu(conv(u, params["m2_w"][i], pad=1), bn2)
    y1 = y1 + u
  y_c3 = bn_silu(conv(jnp.concatenate([y1, y2], axis=1), params["cv3_w"]),
                 params["cv3_bn"])

  # concat + ConvTranspose2d(k=4, s=2, p=1, bias=False) + BN + SiLU
  f1 = jnp.concatenate([f_dir, y_c3], axis=1)
  w = params["up_w"]                                     # (c_in, c_out, 4, 4)
  w_r = jnp.flip(w, axis=(2, 3)).transpose(1, 0, 2, 3)   # -> OIHW
  y = lax.conv_general_dilated(
      f1, w_r, (1, 1), [(2, 2), (2, 2)], lhs_dilation=(2, 2),
      dimension_numbers=("NCHW", "OIHW", "NCHW"), precision=prec)
  return bn_silu(y, params["up_bn"])


if __name__ == "__main__":
  key = jax.random.PRNGKey(0)
  k_par, k_dir, k_iner = jax.random.split(key, 3)

  # Small shapes consistent with the module (x = [f_dir, f_iner]).
  B, H, W = 2, 16, 16
  c_dir1, c_iner1, c_iner2, c2, n_iner = 4, 8, 8, 8, 1

  params = init_params(k_par, c_dir1, c2, c_iner1, c_iner2, n_iner)
  f_dir = jax.random.normal(k_dir, (B, c_dir1, H, W), dtype=jnp.float32)
  f_iner = jax.random.normal(k_iner, (B, c_iner1, H, W), dtype=jnp.float32)

  ref = unet_iner_con_upc3_ref(f_dir, f_iner, params)

  # bt=1: one batch element per grid step (2 parallel steps for a v7x
  # megacore); bt=2: N-batched lanes (grid=(1,)) for single-TC v5e/v6e.
  # Tolerance accounts for bf16 MXU inputs + approx-reciprocal SiLU vs the
  # Precision.HIGHEST f32 reference.
  for bt in (1, 2):
    out = jax.block_until_ready(
        unet_iner_con_upc3(f_dir, f_iner, params, batch_tile=bt))
    assert out.shape == (B, c2, 2 * H, 2 * W), out.shape
    err = float(jnp.max(jnp.abs(out - ref)))
    assert err < 5e-2, f"bt={bt}: mismatch vs reference: max abs err = {err}"

  print("KERNEL_OK")
</pallas_src>

<mosaic_0001>
module attributes {stable_mosaic.version = 11 : i64} {
  func.func @_unet_iner_con_upc3_kernel(%arg0: i32, %arg1: memref<1x4x256xf32, #tpu.memory_space<vmem>>, %arg2: memref<1x8x256xf32, #tpu.memory_space<vmem>>, %arg3: memref<3x3x1x256xf32, #tpu.memory_space<vmem>>, %arg4: memref<8x8xbf16, #tpu.memory_space<vmem>>, %arg5: memref<8x1xf32, #tpu.memory_space<vmem>>, %arg6: memref<1x4x4xbf16, #tpu.memory_space<vmem>>, %arg7: memref<1x4x1xf32, #tpu.memory_space<vmem>>, %arg8: memref<1x4x36xbf16, #tpu.memory_space<vmem>>, %arg9: memref<1x4x1xf32, #tpu.memory_space<vmem>>, %arg10: memref<8x8xbf16, #tpu.memory_space<vmem>>, %arg11: memref<8x1xf32, #tpu.memory_space<vmem>>, %arg12: memref<4x8x48xbf16, #tpu.memory_space<vmem>>, %arg13: memref<8x1xf32, #tpu.memory_space<vmem>>, %arg14: memref<1x4x8x256xf32, #tpu.memory_space<vmem>>, %arg15: memref<8x256xbf16, #tpu.memory_space<vmem>>, %arg16: memref<12x256xf32, #tpu.memory_space<vmem>>, %arg17: memref<36x256xbf16, #tpu.memory_space<vmem>>, %arg18: memref<48x256xbf16, #tpu.memory_space<vmem>>) attributes {dimension_semantics = [#tpu.dimension_semantics<parallel>], iteration_bounds = array<i64: 2>, scalar_prefetch = 0 : i64, scratch_operands = 4 : i64, tpu.core_type = #tpu.core_type<tc>, window_params = [{transform_indices = @transform_0, window_bounds = array<i64: 1, 4, 256>}, {transform_indices = @transform_1, window_bounds = array<i64: 1, 8, 256>}, {pipeline_mode = #tpu.pipeline_mode<synchronous>, transform_indices = @transform_2, window_bounds = array<i64: 3, 3, 1, 256>}, {pipeline_mode = #tpu.pipeline_mode<synchronous>, transform_indices = @transform_3, window_bounds = array<i64: 8, 8>}, {pipeline_mode = #tpu.pipeline_mode<synchronous>, transform_indices = @transform_4, window_bounds = array<i64: 8, 1>}, {pipeline_mode = #tpu.pipeline_mode<synchronous>, transform_indices = @transform_5, window_bounds = array<i64: 1, 4, 4>}, {pipeline_mode = #tpu.pipeline_mode<synchronous>, transform_indices = @transform_6, window_bounds = array<i64: 1, 4, 1>}, {pipeline_mode = #tpu.pipeline_mode<synchronous>, transform_indices = @transform_7, window_bounds = array<i64: 1, 4, 36>}, {pipeline_mode = #tpu.pipeline_mode<synchronous>, transform_indices = @transform_8, window_bounds = array<i64: 1, 4, 1>}, {pipeline_mode = #tpu.pipeline_mode<synchronous>, transform_indices = @transform_9, window_bounds = array<i64: 8, 8>}, {pipeline_mode = #tpu.pipeline_mode<synchronous>, transform_indices = @transform_10, window_bounds = array<i64: 8, 1>}, {pipeline_mode = #tpu.pipeline_mode<synchronous>, transform_indices = @transform_11, window_bounds = array<i64: 4, 8, 48>}, {pipeline_mode = #tpu.pipeline_mode<synchronous>, transform_indices = @transform_12, window_bounds = array<i64: 8, 1>}, {transform_indices = @transform_13, window_bounds = array<i64: 1, 4, 8, 256>}]} {
    %c0 = arith.constant 0 : index
    %c0_0 = arith.constant 0 : index
    %c0_1 = arith.constant 0 : index
    %0 = vector.load %arg2[%c0, %c0_0, %c0_1] : memref<1x8x256xf32, #tpu.memory_space<vmem>>, vector<1x8x256xf32>
    %1 = vector.shape_cast %0 : vector<1x8x256xf32> to vector<8x256xf32>
    %2 = arith.truncf %1 : vector<8x256xf32> to vector<8x256xbf16>
    %c0_2 = arith.constant 0 : index
    %c0_3 = arith.constant 0 : index
    %3 = vector.load %arg4[%c0_2, %c0_3] : memref<8x8xbf16, #tpu.memory_space<vmem>>, vector<8x8xbf16>
    %cst = arith.constant dense<0.000000e+00> : vector<8x256xf32>
    %4 = tpu.matmul %3, %2, %cst {dimension_numbers = #tpu.dot_dimension_numbers<[1], [0], [0], [1], [0, 0, 1, 1], [], []>} : vector<8x8xbf16>, vector<8x256xbf16>, vector<8x256xf32> -> vector<8x256xf32>
    %c0_4 = arith.constant 0 : index
    %c0_5 = arith.constant 0 : index
    %5 = vector.load %arg5[%c0_4, %c0_5] : memref<8x1xf32, #tpu.memory_space<vmem>>, vector<8x1xf32>
    %6 = vector.broadcast %5 : vector<8x1xf32> to vector<8x256xf32>
    %7 = arith.addf %4, %6 : vector<8x256xf32>
    %cst_6 = arith.constant 0.000000e+00 : f32
    %8 = vector.broadcast %cst_6 : f32 to vector<8x256xf32>
    %9 = arith.subf %8, %7 : vector<8x256xf32>
    %10 = math.exp %9 : vector<8x256xf32>
    %cst_7 = arith.constant 1.000000e+00 : f32
    %11 = vector.broadcast %cst_7 : f32 to vector<8x256xf32>
    %12 = arith.addf %11, %10 : vector<8x256xf32>
    %13 = tpu.reciprocal %12 {approx = true} : vector<8x256xf32> -> vector<8x256xf32>
    %14 = arith.mulf %7, %13 : vector<8x256xf32>
    %15 = vector.extract_strided_slice %14 {offsets = [0, 0], sizes = [4, 256], strides = [1, 1]} : vector<8x256xf32> to vector<4x256xf32>
    %16 = vector.extract_strided_slice %14 {offsets = [4, 0], sizes = [4, 256], strides = [1, 1]} : vector<8x256xf32> to vector<4x256xf32>
    %c0_8 = arith.constant 0 : index
    %c0_9 = arith.constant 0 : index
    %c0_10 = arith.constant 0 : index
    %17 = vector.load %arg6[%c0_8, %c0_9, %c0_10] : memref<1x4x4xbf16, #tpu.memory_space<vmem>>, vector<1x4x4xbf16>
    %18 = vector.shape_cast %17 : vector<1x4x4xbf16> to vector<4x4xbf16>
    %19 = arith.truncf %15 : vector<4x256xf32> to vector<4x256xbf16>
    %cst_11 = arith.constant dense<0.000000e+00> : vector<4x256xf32>
    %20 = tpu.matmul %18, %19, %cst_11 {dimension_numbers = #tpu.dot_dimension_numbers<[1], [0], [0], [1], [0, 0, 1, 1], [], []>} : vector<4x4xbf16>, vector<4x256xbf16>, vector<4x256xf32> -> vector<4x256xf32>
    %c0_12 = arith.constant 0 : index
    %c0_13 = arith.constant 0 : index
    %c0_14 = arith.constant 0 : index
    %21 = vector.load %arg7[%c0_12, %c0_13, %c0_14] : memref<1x4x1xf32, #tpu.memory_space<vmem>>, vector<1x4x1xf32>
    %22 = vector.shape_cast %21 : vector<1x4x1xf32> to vector<4x1xf32>
    %23 = vector.broadcast %22 : vector<4x1xf32> to vector<4x256xf32>
    %24 = arith.addf %20, %23 : vector<4x256xf32>
    %cst_15 = arith.constant 0.000000e+00 : f32
    %25 = vector.broadcast %cst_15 : f32 to vector<4x256xf32>
    %26 = arith.subf %25, %24 : vector<4x256xf32>
    %27 = math.exp %26 : vector<4x256xf32>
    %cst_16 = arith.constant 1.000000e+00 : f32
    %28 = vector.broadcast %cst_16 : f32 to vector<4x256xf32>
    %29 = arith.addf %28, %27 : vector<4x256xf32>
    %30 = tpu.reciprocal %29 {approx = true} : vector<4x256xf32> -> vector<4x256xf32>
    %31 = arith.mulf %24, %30 : vector<4x256xf32>
    %32 = vector.extract_strided_slice %31 {offsets = [0, 239], sizes = [4, 17], strides = [1, 1]} : vector<4x256xf32> to vector<4x17xf32>
    %33 = vector.extract_strided_slice %31 {offsets = [0, 0], sizes = [4, 239], strides = [1, 1]} : vector<4x256xf32> to vector<4x239xf32>
    %34 = tpu.concatenate %32, %33 in 1 : vector<4x17xf32>, vector<4x239xf32> -> vector<4x256xf32>
    %c0_17 = arith.constant 0 : index
    %c0_18 = arith.constant 0 : index
    %c0_19 = arith.constant 0 : index
    %c0_20 = arith.constant 0 : index
    %35 = vector.load %arg3[%c0_17, %c0_18, %c0_19, %c0_20] : memref<3x3x1x256xf32, #tpu.memory_space<vmem>>, vector<1x1x1x256xf32>
    %36 = vector.shape_cast %35 : vector<1x1x1x256xf32> to vector<1x256xf32>
    %37 = vector.broadcast %36 : vector<1x256xf32> to vector<4x256xf32>
    %38 = arith.mulf %34, %37 : vector<4x256xf32>
    %39 = arith.truncf %38 : vector<4x256xf32> to vector<4x256xbf16>
    %c0_21 = arith.constant 0 : index
    %c0_22 = arith.constant 0 : index
    %40 = vector.load %arg17[%c0_21, %c0_22] : memref<36x256xbf16, #tpu.memory_space<vmem>>, vector<4x256xbf16>
    tpu.vector_store %arg17[%c0_21, %c0_22], %39 {strides = array<i32>} : memref<36x256xbf16, #tpu.memory_space<vmem>>, vector<4x256xbf16>,
    %41 = vector.extract_strided_slice %31 {offsets = [0, 240], sizes = [4, 16], strides = [1, 1]} : vector<4x256xf32> to vector<4x16xf32>
    %42 = vector.extract_strided_slice %31 {offsets = [0, 0], sizes = [4, 240], strides = [1, 1]} : vector<4x256xf32> to vector<4x240xf32>
    %43 = tpu.concatenate %41, %42 in 1 : vector<4x16xf32>, vector<4x240xf32> -> vector<4x256xf32>
    %c0_23 = arith.constant 0 : index
    %c1 = arith.constant 1 : index
    %c0_24 = arith.constant 0 : index
    %c0_25 = arith.constant 0 : index
    %44 = vector.load %arg3[%c0_23, %c1, %c0_24, %c0_25] : memref<3x3x1x256xf32, #tpu.memory_space<vmem>>, vector<1x1x1x256xf32>
    %45 = vector.shape_cast %44 : vector<1x1x1x256xf32> to vector<1x256xf32>
    %46 = vector.broadcast %45 : vector<1x256xf32> to vector<4x256xf32>
    %47 = arith.mulf %43, %46 : vector<4x256xf32>
    %48 = arith.truncf %47 : vector<4x256xf32> to vector<4x256xbf16>
    %c4 = arith.constant 4 : index
    %c0_26 = arith.constant 0 : index
    %49 = vector.load %arg17[%c4, %c0_26] : memref<36x256xbf16, #tpu.memory_space<vmem>>, vector<4x256xbf16>
    tpu.vector_store %arg17[%c4, %c0_26], %48 {strides = array<i32>} : memref<36x256xbf16, #tpu.memory_space<vmem>>, vector<4x256xbf16>,
    %50 = vector.extract_strided_slice %31 {offsets = [0, 241], sizes = [4, 15], strides = [1, 1]} : vector<4x256xf32> to vector<4x15xf32>
    %51 = vector.extract_strided_slice %31 {offsets = [0, 0], sizes = [4, 241], strides = [1, 1]} : vector<4x256xf32> to vector<4x241xf32>
    %52 = tpu.concatenate %50, %51 in 1 : vector<4x15xf32>, vector<4x241xf32> -> vector<4x256xf32>
    %c0_27 = arith.constant 0 : index
    %c2 = arith.constant 2 : index
    %c0_28 = arith.constant 0 : index
    %c0_29 = arith.constant 0 : index
    %53 = vector.load %arg3[%c0_27, %c2, %c0_28, %c0_29] : memref<3x3x1x256xf32, #tpu.memory_space<vmem>>, vector<1x1x1x256xf32>
    %54 = vector.shape_cast %53 : vector<1x1x1x256xf32> to vector<1x256xf32>
    %55 = vector.broadcast %54 : vector<1x256xf32> to vector<4x256xf32>
    %56 = arith.mulf %52, %55 : vector<4x256xf32>
    %57 = arith.truncf %56 : vector<4x256xf32> to vector<4x256xbf16>
    %c8 = arith.constant 8 : index
    %c0_30 = arith.constant 0 : index
    %58 = vector.load %arg17[%c8, %c0_30] : memref<36x256xbf16, #tpu.memory_space<vmem>>, vector<4x256xbf16>
    tpu.vector_store %arg17[%c8, %c0_30], %57 {strides = array<i32>} : memref<36x256xbf16, #tpu.memory_space<vmem>>, vector<4x256xbf16>,
    %59 = vector.extract_strided_slice %31 {offsets = [0, 255], sizes = [4, 1], strides = [1, 1]} : vector<4x256xf32> to vector<4x1xf32>
    %60 = vector.extract_strided_slice %31 {offsets = [0, 0], sizes = [4, 255], strides = [1, 1]} : vector<4x256xf32> to vector<4x255xf32>
    %61 = tpu.concatenate %59, %60 in 1 : vector<4x1xf32>, vector<4x255xf32> -> vector<4x256xf32>
    %c1_31 = arith.constant 1 : index
    %c0_32 = arith.constant 0 : index
    %c0_33 = arith.constant 0 : index
    %c0_34 = arith.constant 0 : index
    %62 = vector.load %arg3[%c1_31, %c0_32, %c0_33, %c0_34] : memref<3x3x1x256xf32, #tpu.memory_space<vmem>>, vector<1x1x1x256xf32>
    %63 = vector.shape_cast %62 : vector<1x1x1x256xf32> to vector<1x256xf32>
    %64 = vector.broadcast %63 : vector<1x256xf32> to vector<4x256xf32>
    %65 = arith.mulf %61, %64 : vector<4x256xf32>
    %66 = arith.truncf %65 : vector<4x256xf32> to vector<4x256xbf16>
    %c12 = arith.constant 12 : index
    %c0_35 = arith.constant 0 : index
    %67 = vector.load %arg17[%c12, %c0_35] : memref<36x256xbf16, #tpu.memory_space<vmem>>, vector<4x256xbf16>
    tpu.vector_store %arg17[%c12, %c0_35], %66 {strides = array<i32>} : memref<36x256xbf16, #tpu.memory_space<vmem>>, vector<4x256xbf16>,
    %68 = arith.truncf %31 : vector<4x256xf32> to vector<4x256xbf16>
    %c16 = arith.constant 16 : index
    %c0_36 = arith.constant 0 : index
    %69 = vector.load %arg17[%c16, %c0_36] : memref<36x256xbf16, #tpu.memory_space<vmem>>, vector<4x256xbf16>
    tpu.vector_store %arg17[%c16, %c0_36], %68 {strides = array<i32>} : memref<36x256xbf16, #tpu.memory_space<vmem>>, vector<4x256xbf16>,
    %70 = vector.extract_strided_slice %31 {offsets = [0, 1], sizes = [4, 255], strides = [1, 1]} : vector<4x256xf32> to vector<4x255xf32>
    %71 = vector.extract_strided_slice %31 {offsets = [0, 0], sizes = [4, 1], strides = [1, 1]} : vector<4x256xf32> to vector<4x1xf32>
    %72 = tpu.concatenate %70, %71 in 1 : vector<4x255xf32>, vector<4x1xf32> -> vector<4x256xf32>
    %c1_37 = arith.constant 1 : index
    %c2_38 = arith.constant 2 : index
    %c0_39 = arith.constant 0 : index
    %c0_40 = arith.constant 0 : index
    %73 = vector.load %arg3[%c1_37, %c2_38, %c0_39, %c0_40] : memref<3x3x1x256xf32, #tpu.memory_space<vmem>>, vector<1x1x1x256xf32>
    %74 = vector.shape_cast %73 : vector<1x1x1x256xf32> to vector<1x256xf32>
    %75 = vector.broadcast %74 : vector<1x256xf32> to vector<4x256xf32>
    %76 = arith.mulf %72, %75 : vector<4x256xf32>
    %77 = arith.truncf %76 : vector<4x256xf32> to vector<4x256xbf16>
    %c20 = arith.constant 20 : index
    %c0_41 = arith.constant 0 : index
    %78 = vector.load %arg17[%c20, %c0_41] : memref<36x256xbf16, #tpu.memory_space<vmem>>, vector<4x256xbf16>
    tpu.vector_store %arg17[%c20, %c0_41], %77 {strides = array<i32>} : memref<36x256xbf16, #tpu.memory_space<vmem>>, vector<4x256xbf16>,
    %79 = vector.extract_strided_slice %31 {offsets = [0, 15], sizes = [4, 241], strides = [1, 1]} : vector<4x256xf32> to vector<4x241xf32>
    %80 = vector.extract_strided_slice %31 {offsets = [0, 0], sizes = [4, 15], strides = [1, 1]} : vector<4x256xf32> to vector<4x15xf32>
    %81 = tpu.concatenate %79, %80 in 1 : vector<4x241xf32>, vector<4x15xf32> -> vector<4x256xf32>
    %c2_42 = arith.constant 2 : index
    %c0_43 = arith.constant 0 : index
    %c0_44 = arith.constant 0 : index
    %c0_45 = arith.constant 0 : index
    %82 = vector.load %arg3[%c2_42, %c0_43, %c0_44, %c0_45] : memref<3x3x1x256xf32, #tpu.memory_space<vmem>>, vector<1x1x1x256xf32>
    %83 = vector.shape_cast %82 : vector<1x1x1x256xf32> to vector<1x256xf32>
    %84 = vector.broadcast %83 : vector<1x256xf32> to vector<4x256xf32>
    %85 = arith.mulf %81, %84 : vector<4x256xf32>
    %86 = arith.truncf %85 : vector<4x256xf32> to vector<4x256xbf16>
    %c24 = arith.constant 24 : index
    %c0_46 = arith.constant 0 : index
    %87 = vector.load %arg17[%c24, %c0_46] : memref<36x256xbf16, #tpu.memory_space<vmem>>, vector<4x256xbf16>
    tpu.vector_store %arg17[%c24, %c0_46], %86 {strides = array<i32>} : memref<36x256xbf16, #tpu.memory_space<vmem>>, vector<4x256xbf16>,
    %88 = vector.extract_strided_slice %31 {offsets = [0, 16], sizes = [4, 240], strides = [1, 1]} : vector<4x256xf32> to vector<4x240xf32>
    %89 = vector.extract_strided_slice %31 {offsets = [0, 0], sizes = [4, 16], strides = [1, 1]} : vector<4x256xf32> to vector<4x16xf32>
    %90 = tpu.concatenate %88, %89 in 1 : vector<4x240xf32>, vector<4x16xf32> -> vector<4x256xf32>
    %c2_47 = arith.constant 2 : index
    %c1_48 = arith.constant 1 : index
    %c0_49 = arith.constant 0 : index
    %c0_50 = arith.constant 0 : index
    %91 = vector.load %arg3[%c2_47, %c1_48, %c0_49, %c0_50] : memref<3x3x1x256xf32, #tpu.memory_space<vmem>>, vector<1x1x1x256xf32>
    %92 = vector.shape_cast %91 : vector<1x1x1x256xf32> to vector<1x256xf32>
    %93 = vector.broadcast %92 : vector<1x256xf32> to vector<4x256xf32>
    %94 = arith.mulf %90, %93 : vector<4x256xf32>
    %95 = arith.truncf %94 : vector<4x256xf32> to vector<4x256xbf16>
    %c28 = arith.constant 28 : index
    %c0_51 = arith.constant 0 : index
    %96 = vector.load %arg17[%c28, %c0_51] : memref<36x256xbf16, #tpu.memory_space<vmem>>, vector<4x256xbf16>
    tpu.vector_store %arg17[%c28, %c0_51], %95 {strides = array<i32>} : memref<36x256xbf16, #tpu.memory_space<vmem>>, vector<4x256xbf16>,
    %97 = vector.extract_strided_slice %31 {offsets = [0, 17], sizes = [4, 239], strides = [1, 1]} : vector<4x256xf32> to vector<4x239xf32>
    %98 = vector.extract_strided_slice %31 {offsets = [0, 0], sizes = [4, 17], strides = [1, 1]} : vector<4x256xf32> to vector<4x17xf32>
    %99 = tpu.concatenate %97, %98 in 1 : vector<4x239xf32>, vector<4x17xf32> -> vector<4x256xf32>
    %c2_52 = arith.constant 2 : index
    %c2_53 = arith.constant 2 : index
    %c0_54 = arith.constant 0 : index
    %c0_55 = arith.constant 0 : index
    %100 = vector.load %arg3[%c2_52, %c2_53, %c0_54, %c0_55] : memref<3x3x1x256xf32, #tpu.memory_space<vmem>>, vector<1x1x1x256xf32>
    %101 = vector.shape_cast %100 : vector<1x1x1x256xf32> to vector<1x256xf32>
    %102 = vector.broadcast %101 : vector<1x256xf32> to vector<4x256xf32>
    %103 = arith.mulf %99, %102 : vector<4x256xf32>
    %104 = arith.truncf %103 : vector<4x256xf32> to vector<4x256xbf16>
    %c32 = arith.constant 32 : index
    %c0_56 = arith.constant 0 : index
    %105 = vector.load %arg17[%c32, %c0_56] : memref<36x256xbf16, #tpu.memory_space<vmem>>, vector<4x256xbf16>
    tpu.vector_store %arg17[%c32, %c0_56], %104 {strides = array<i32>} : memref<36x256xbf16, #tpu.memory_space<vmem>>, vector<4x256xbf16>,
    %c0_57 = arith.constant 0 : index
    %c0_58 = arith.constant 0 : index
    %c0_59 = arith.constant 0 : index
    %106 = vector.load %arg8[%c0_57, %c0_58, %c0_59] : memref<1x4x36xbf16, #tpu.memory_space<vmem>>, vector<1x4x36xbf16>
    %107 = vector.shape_cast %106 : vector<1x4x36xbf16> to vector<4x36xbf16>
    %c0_60 = arith.constant 0 : index
    %c0_61 = arith.constant 0 : index
    %108 = vector.load %arg17[%c0_60, %c0_61] : memref<36x256xbf16, #tpu.memory_space<vmem>>, vector<36x256xbf16>
    %cst_62 = arith.constant dense<0.000000e+00> : vector<4x256xf32>
    %109 = tpu.matmul %107, %108, %cst_62 {dimension_numbers = #tpu.dot_dimension_numbers<[1], [0], [0], [1], [0, 0, 1, 1], [], []>} : vector<4x36xbf16>, vector<36x256xbf16>, vector<4x256xf32> -> vector<4x256xf32>
    %c0_63 = arith.constant 0 : index
    %c0_64 = arith.constant 0 : index
    %c0_65 = arith.constant 0 : index
    %110 = vector.load %arg9[%c0_63, %c0_64, %c0_65] : memref<1x4x1xf32, #tpu.memory_space<vmem>>, vector<1x4x1xf32>
    %111 = vector.shape_cast %110 : vector<1x4x1xf32> to vector<4x1xf32>
    %112 = vector.broadcast %111 : vector<4x1xf32> to vector<4x256xf32>
    %113 = arith.addf %109, %112 : vector<4x256xf32>
    %cst_66 = arith.constant 0.000000e+00 : f32
    %114 = vector.broadcast %cst_66 : f32 to vector<4x256xf32>
    %115 = arith.subf %114, %113 : vector<4x256xf32>
    %116 = math.exp %115 : vector<4x256xf32>
    %cst_67 = arith.constant 1.000000e+00 : f32
    %117 = vector.broadcast %cst_67 : f32 to vector<4x256xf32>
    %118 = arith.addf %117, %116 : vector<4x256xf32>
    %119 = tpu.reciprocal %118 {approx = true} : vector<4x256xf32> -> vector<4x256xf32>
    %120 = arith.mulf %113, %119 : vector<4x256xf32>
    %121 = arith.addf %15, %120 : vector<4x256xf32>
    %122 = arith.truncf %121 : vector<4x256xf32> to vector<4x256xbf16>
    %c0_68 = arith.constant 0 : index
    %c0_69 = arith.constant 0 : index
    %123 = vector.load %arg15[%c0_68, %c0_69] : memref<8x256xbf16, #tpu.memory_space<vmem>>, vector<4x256xbf16>
    tpu.vector_store %arg15[%c0_68, %c0_69], %122 {strides = array<i32>} : memref<8x256xbf16, #tpu.memory_space<vmem>>, vector<4x256xbf16>,
    %124 = arith.truncf %16 : vector<4x256xf32> to vector<4x256xbf16>
    %c4_70 = arith.constant 4 : index
    %c0_71 = arith.constant 0 : index
    %125 = vector.load %arg15[%c4_70, %c0_71] : memref<8x256xbf16, #tpu.memory_space<vmem>>, vector<4x256xbf16>
    tpu.vector_store %arg15[%c4_70, %c0_71], %124 {strides = array<i32>} : memref<8x256xbf16, #tpu.memory_space<vmem>>, vector<4x256xbf16>,
    %c0_72 = arith.constant 0 : index
    %c0_73 = arith.constant 0 : index
    %126 = vector.load %arg10[%c0_72, %c0_73] : memref<8x8xbf16, #tpu.memory_space<vmem>>, vector<8x8xbf16>
    %c0_74 = arith.constant 0 : index
    %c0_75 = arith.constant 0 : index
    %127 = vector.load %arg15[%c0_74, %c0_75] : memref<8x256xbf16, #tpu.memory_space<vmem>>, vector<8x256xbf16>
    %cst_76 = arith.constant dense<0.000000e+00> : vector<8x256xf32>
    %128 = tpu.matmul %126, %127, %cst_76 {dimension_numbers = #tpu.dot_dimension_numbers<[1], [0], [0], [1], [0, 0, 1, 1], [], []>} : vector<8x8xbf16>, vector<8x256xbf16>, vector<8x256xf32> -> vector<8x256xf32>
    %c0_77 = arith.constant 0 : index
    %c0_78 = arith.constant 0 : index
    %129 = vector.load %arg11[%c0_77, %c0_78] : memref<8x1xf32, #tpu.memory_space<vmem>>, vector<8x1xf32>
    %130 = vector.broadcast %129 : vector<8x1xf32> to vector<8x256xf32>
    %131 = arith.addf %128, %130 : vector<8x256xf32>
    %cst_79 = arith.constant 0.000000e+00 : f32
    %132 = vector.broadcast %cst_79 : f32 to vector<8x256xf32>
    %133 = arith.subf %132, %131 : vector<8x256xf32>
    %134 = math.exp %133 : vector<8x256xf32>
    %cst_80 = arith.constant 1.000000e+00 : f32
    %135 = vector.broadcast %cst_80 : f32 to vector<8x256xf32>
    %136 = arith.addf %135, %134 : vector<8x256xf32>
    %137 = tpu.reciprocal %136 {approx = true} : vector<8x256xf32> -> vector<8x256xf32>
    %138 = arith.mulf %131, %137 : vector<8x256xf32>
    %c0_81 = arith.constant 0 : index
    %c0_82 = arith.constant 0 : index
    %c0_83 = arith.constant 0 : index
    %139 = vector.load %arg1[%c0_81, %c0_82, %c0_83] : memref<1x4x256xf32, #tpu.memory_space<vmem>>, vector<1x4x256xf32>
    %140 = vector.shape_cast %139 : vector<1x4x256xf32> to vector<4x256xf32>
    %c0_84 = arith.constant 0 : index
    %c0_85 = arith.constant 0 : index
    %141 = vector.load %arg16[%c0_84, %c0_85] : memref<12x256xf32, #tpu.memory_space<vmem>>, vector<4x256xf32>
    tpu.vector_store %arg16[%c0_84, %c0_85], %140 {strides = array<i32>} : memref<12x256xf32, #tpu.memory_space<vmem>>, vector<4x256xf32>,
    %c4_86 = arith.constant 4 : index
    %c0_87 = arith.constant 0 : index
    %142 = vector.load %arg16[%c4_86, %c0_87] : memref<12x256xf32, #tpu.memory_space<vmem>>, vector<8x256xf32>
    tpu.vector_store %arg16[%c4_86, %c0_87], %138 {strides = array<i32>} : memref<12x256xf32, #tpu.memory_space<vmem>>, vector<8x256xf32>,
    %c0_88 = arith.constant 0 : index
    %c0_89 = arith.constant 0 : index
    %143 = vector.load %arg16[%c0_88, %c0_89] : memref<12x256xf32, #tpu.memory_space<vmem>>, vector<12x256xf32>
    %c0_90 = arith.constant 0 : index
    %c0_91 = arith.constant 0 : index
    %144 = vector.load %arg13[%c0_90, %c0_91] : memref<8x1xf32, #tpu.memory_space<vmem>>, vector<8x1xf32>
    %145 = arith.truncf %143 : vector<12x256xf32> to vector<12x256xbf16>
    %c0_92 = arith.constant 0 : index
    %c0_93 = arith.constant 0 : index
    %146 = vector.load %arg18[%c0_92, %c0_93] : memref<48x256xbf16, #tpu.memory_space<vmem>>, vector<12x256xbf16>
    tpu.vector_store %arg18[%c0_92, %c0_93], %145 {strides = array<i32>} : memref<48x256xbf16, #tpu.memory_space<vmem>>, vector<12x256xbf16>,
    %147 = vector.extract_strided_slice %143 {offsets = [0, 255], sizes = [12, 1], strides = [1, 1]} : vector<12x256xf32> to vector<12x1xf32>
    %148 = vector.extract_strided_slice %143 {offsets = [0, 0], sizes = [12, 255], strides = [1, 1]} : vector<12x256xf32> to vector<12x255xf32>
    %149 = tpu.concatenate %147, %148 in 1 : vector<12x1xf32>, vector<12x255xf32> -> vector<12x256xf32>
    %c1_94 = arith.constant 1 : index
    %c0_95 = arith.constant 0 : index
    %c0_96 = arith.constant 0 : index
    %c0_97 = arith.constant 0 : index
    %150 = vector.load %arg3[%c1_94, %c0_95, %c0_96, %c0_97] : memref<3x3x1x256xf32, #tpu.memory_space<vmem>>, vector<1x1x1x256xf32>
    %151 = vector.shape_cast %150 : vector<1x1x1x256xf32> to vector<1x256xf32>
    %152 = vector.broadcast %151 : vector<1x256xf32> to vector<12x256xf32>
    %153 = arith.mulf %149, %152 : vector<12x256xf32>
    %154 = arith.truncf %153 : vector<12x256xf32> to vector<12x256xbf16>
    %c12_98 = arith.constant 12 : index
    %c0_99 = arith.constant 0 : index
    %155 = vector.load %arg18[%c12_98, %c0_99] : memref<48x256xbf16, #tpu.memory_space<vmem>>, vector<12x256xbf16>
    tpu.vector_store %arg18[%c12_98, %c0_99], %154 {strides = array<i32>} : memref<48x256xbf16, #tpu.memory_space<vmem>>, vector<12x256xbf16>,
    %156 = vector.extract_strided_slice %143 {offsets = [0, 240], sizes = [12, 16], strides = [1, 1]} : vector<12x256xf32> to vector<12x16xf32>
    %157 = vector.extract_strided_slice %143 {offsets = [0, 0], sizes = [12, 240], strides = [1, 1]} : vector<12x256xf32> to vector<12x240xf32>
    %158 = tpu.concatenate %156, %157 in 1 : vector<12x16xf32>, vector<12x240xf32> -> vector<12x256xf32>
    %c0_100 = arith.constant 0 : index
    %c1_101 = arith.constant 1 : index
    %c0_102 = arith.constant 0 : index
    %c0_103 = arith.constant 0 : index
    %159 = vector.load %arg3[%c0_100, %c1_101, %c0_102, %c0_103] : memref<3x3x1x256xf32, #tpu.memory_space<vmem>>, vector<1x1x1x256xf32>
    %160 = vector.shape_cast %159 : vector<1x1x1x256xf32> to vector<1x256xf32>
    %161 = vector.broadcast %160 : vector<1x256xf32> to vector<12x256xf32>
    %162 = arith.mulf %158, %161 : vector<12x256xf32>
    %163 = arith.truncf %162 : vector<12x256xf32> to vector<12x256xbf16>
    %c24_104 = arith.constant 24 : index
    %c0_105 = arith.constant 0 : index
    %164 = vector.load %arg18[%c24_104, %c0_105] : memref<48x256xbf16, #tpu.memory_space<vmem>>, vector<12x256xbf16>
    tpu.vector_store %arg18[%c24_104, %c0_105], %163 {strides = array<i32>} : memref<48x256xbf16, #tpu.memory_space<vmem>>, vector<12x256xbf16>,
    %165 = vector.extract_strided_slice %143 {offsets = [0, 239], sizes = [12, 17], strides = [1, 1]} : vector<12x256xf32> to vector<12x17xf32>
    %166 = vector.extract_strided_slice %143 {offsets = [0, 0], sizes = [12, 239], strides = [1, 1]} : vector<12x256xf32> to vector<12x239xf32>
    %167 = tpu.concatenate %165, %166 in 1 : vector<12x17xf32>, vector<12x239xf32> -> vector<12x256xf32>
    %c0_106 = arith.constant 0 : index
    %c0_107 = arith.constant 0 : index
    %c0_108 = arith.constant 0 : index
    %c0_109 = arith.constant 0 : index
    %168 = vector.load %arg3[%c0_106, %c0_107, %c0_108, %c0_109] : memref<3x3x1x256xf32, #tpu.memory_space<vmem>>, vector<1x1x1x256xf32>
    %169 = vector.shape_cast %168 : vector<1x1x1x256xf32> to vector<1x256xf32>
    %170 = vector.broadcast %169 : vector<1x256xf32> to vector<12x256xf32>
    %171 = arith.mulf %167, %170 : vector<12x256xf32>
    %172 = arith.truncf %171 : vector<12x256xf32> to vector<12x256xbf16>
    %c36 = arith.constant 36 : index
    %c0_110 = arith.constant 0 : index
    %173 = vector.load %arg18[%c36, %c0_110] : memref<48x256xbf16, #tpu.memory_space<vmem>>, vector<12x256xbf16>
    tpu.vector_store %arg18[%c36, %c0_110], %172 {strides = array<i32>} : memref<48x256xbf16, #tpu.memory_space<vmem>>, vector<12x256xbf16>,
    %c0_111 = arith.constant 0 : index
    %c0_112 = arith.constant 0 : index
    %c0_113 = arith.constant 0 : index
    %174 = vector.load %arg12[%c0_111, %c0_112, %c0_113] : memref<4x8x48xbf16, #tpu.memory_space<vmem>>, vector<1x8x48xbf16>
    %175 = vector.shape_cast %174 : vector<1x8x48xbf16> to vector<8x48xbf16>
    %c0_114 = arith.constant 0 : index
    %c0_115 = arith.constant 0 : index
    %176 = vector.load %arg18[%c0_114, %c0_115] : memref<48x256xbf16, #tpu.memory_space<vmem>>, vector<48x256xbf16>
    %cst_116 = arith.constant dense<0.000000e+00> : vector<8x256xf32>
    %177 = tpu.matmul %175, %176, %cst_116 {dimension_numbers = #tpu.dot_dimension_numbers<[1], [0], [0], [1], [0, 0, 1, 1], [], []>} : vector<8x48xbf16>, vector<48x256xbf16>, vector<8x256xf32> -> vector<8x256xf32>
    %178 = vector.broadcast %144 : vector<8x1xf32> to vector<8x256xf32>
    %179 = arith.addf %177, %178 : vector<8x256xf32>
    %cst_117 = arith.constant 0.000000e+00 : f32
    %180 = vector.broadcast %cst_117 : f32 to vector<8x256xf32>
    %181 = arith.subf %180, %179 : vector<8x256xf32>
    %182 = math.exp %181 : vector<8x256xf32>
    %cst_118 = arith.constant 1.000000e+00 : f32
    %183 = vector.broadcast %cst_118 : f32 to vector<8x256xf32>
    %184 = arith.addf %183, %182 : vector<8x256xf32>
    %185 = tpu.reciprocal %184 {approx = true} : vector<8x256xf32> -> vector<8x256xf32>
    %186 = arith.mulf %179, %185 : vector<8x256xf32>
    %c0_119 = arith.constant 0 : index
    %c0_120 = arith.constant 0 : index
    %c0_121 = arith.constant 0 : index
    %c0_122 = arith.constant 0 : index
    %187 = vector.load %arg14[%c0_119, %c0_120, %c0_121, %c0_122] : memref<1x4x8x256xf32, #tpu.memory_space<vmem>>, vector<1x1x8x256xf32>
    %188 = vector.shape_cast %187 : vector<1x1x8x256xf32> to vector<8x256xf32>
    %189 = vector.shape_cast %186 : vector<8x256xf32> to vector<1x1x8x256xf32>
    tpu.vector_store %arg14[%c0_119, %c0_120, %c0_121, %c0_122], %189 {strides = array<i32>} : memref<1x4x8x256xf32, #tpu.memory_space<vmem>>, vector<1x1x8x256xf32>,
    %190 = vector.extract_strided_slice %143 {offsets = [0, 1], sizes = [12, 255], strides = [1, 1]} : vector<12x256xf32> to vector<12x255xf32>
    %191 = vector.extract_strided_slice %143 {offsets = [0, 0], sizes = [12, 1], strides = [1, 1]} : vector<12x256xf32> to vector<12x1xf32>
    %192 = tpu.concatenate %190, %191 in 1 : vector<12x255xf32>, vector<12x1xf32> -> vector<12x256xf32>
    %c1_123 = arith.constant 1 : index
    %c2_124 = arith.constant 2 : index
    %c0_125 = arith.constant 0 : index
    %c0_126 = arith.constant 0 : index
    %193 = vector.load %arg3[%c1_123, %c2_124, %c0_125, %c0_126] : memref<3x3x1x256xf32, #tpu.memory_space<vmem>>, vector<1x1x1x256xf32>
    %194 = vector.shape_cast %193 : vector<1x1x1x256xf32> to vector<1x256xf32>
    %195 = vector.broadcast %194 : vector<1x256xf32> to vector<12x256xf32>
    %196 = arith.mulf %192, %195 : vector<12x256xf32>
    %197 = arith.truncf %196 : vector<12x256xf32> to vector<12x256xbf16>
    %c0_127 = arith.constant 0 : index
    %c0_128 = arith.constant 0 : index
    %198 = vector.load %arg18[%c0_127, %c0_128] : memref<48x256xbf16, #tpu.memory_space<vmem>>, vector<12x256xbf16>
    tpu.vector_store %arg18[%c0_127, %c0_128], %197 {strides = array<i32>} : memref<48x256xbf16, #tpu.memory_space<vmem>>, vector<12x256xbf16>,
    %c12_129 = arith.constant 12 : index
    %c0_130 = arith.constant 0 : index
    %199 = vector.load %arg18[%c12_129, %c0_130] : memref<48x256xbf16, #tpu.memory_space<vmem>>, vector<12x256xbf16>
    tpu.vector_store %arg18[%c12_129, %c0_130], %145 {strides = array<i32>} : memref<48x256xbf16, #tpu.memory_space<vmem>>, vector<12x256xbf16>,
    %200 = vector.extract_strided_slice %143 {offsets = [0, 241], sizes = [12, 15], strides = [1, 1]} : vector<12x256xf32> to vector<12x15xf32>
    %201 = vector.extract_strided_slice %143 {offsets = [0, 0], sizes = [12, 241], strides = [1, 1]} : vector<12x256xf32> to vector<12x241xf32>
    %202 = tpu.concatenate %200, %201 in 1 : vector<12x15xf32>, vector<12x241xf32> -> vector<12x256xf32>
    %c0_131 = arith.constant 0 : index
    %c2_132 = arith.constant 2 : index
    %c0_133 = arith.constant 0 : index
    %c0_134 = arith.constant 0 : index
    %203 = vector.load %arg3[%c0_131, %c2_132, %c0_133, %c0_134] : memref<3x3x1x256xf32, #tpu.memory_space<vmem>>, vector<1x1x1x256xf32>
    %204 = vector.shape_cast %203 : vector<1x1x1x256xf32> to vector<1x256xf32>
    %205 = vector.broadcast %204 : vector<1x256xf32> to vector<12x256xf32>
    %206 = arith.mulf %202, %205 : vector<12x256xf32>
    %207 = arith.truncf %206 : vector<12x256xf32> to vector<12x256xbf16>
    %c24_135 = arith.constant 24 : index
    %c0_136 = arith.constant 0 : index
    %208 = vector.load %arg18[%c24_135, %c0_136] : memref<48x256xbf16, #tpu.memory_space<vmem>>, vector<12x256xbf16>
    tpu.vector_store %arg18[%c24_135, %c0_136], %207 {strides = array<i32>} : memref<48x256xbf16, #tpu.memory_space<vmem>>, vector<12x256xbf16>,
    %c36_137 = arith.constant 36 : index
    %c0_138 = arith.constant 0 : index
    %209 = vector.load %arg18[%c36_137, %c0_138] : memref<48x256xbf16, #tpu.memory_space<vmem>>, vector<12x256xbf16>
    tpu.vector_store %arg18[%c36_137, %c0_138], %163 {strides = array<i32>} : memref<48x256xbf16, #tpu.memory_space<vmem>>, vector<12x256xbf16>,
    %c1_139 = arith.constant 1 : index
    %c0_140 = arith.constant 0 : index
    %c0_141 = arith.constant 0 : index
    %210 = vector.load %arg12[%c1_139, %c0_140, %c0_141] : memref<4x8x48xbf16, #tpu.memory_space<vmem>>, vector<1x8x48xbf16>
    %211 = vector.shape_cast %210 : vector<1x8x48xbf16> to vector<8x48xbf16>
    %c0_142 = arith.constant 0 : index
    %c0_143 = arith.constant 0 : index
    %212 = vector.load %arg18[%c0_142, %c0_143] : memref<48x256xbf16, #tpu.memory_space<vmem>>, vector<48x256xbf16>
    %cst_144 = arith.constant dense<0.000000e+00> : vector<8x256xf32>
    %213 = tpu.matmul %211, %212, %cst_144 {dimension_numbers = #tpu.dot_dimension_numbers<[1], [0], [0], [1], [0, 0, 1, 1], [], []>} : vector<8x48xbf16>, vector<48x256xbf16>, vector<8x256xf32> -> vector<8x256xf32>
    %214 = vector.broadcast %144 : vector<8x1xf32> to vector<8x256xf32>
    %215 = arith.addf %213, %214 : vector<8x256xf32>
    %cst_145 = arith.constant 0.000000e+00 : f32
    %216 = vector.broadcast %cst_145 : f32 to vector<8x256xf32>
    %217 = arith.subf %216, %215 : vector<8x256xf32>
    %218 = math.exp %217 : vector<8x256xf32>
    %cst_146 = arith.constant 1.000000e+00 : f32
    %219 = vector.broadcast %cst_146 : f32 to vector<8x256xf32>
    %220 = arith.addf %219, %218 : vector<8x256xf32>
    %221 = tpu.reciprocal %220 {approx = true} : vector<8x256xf32> -> vector<8x256xf32>
    %222 = arith.mulf %215, %221 : vector<8x256xf32>
    %c0_147 = arith.constant 0 : index
    %c1_148 = arith.constant 1 : index
    %c0_149 = arith.constant 0 : index
    %c0_150 = arith.constant 0 : index
    %223 = vector.load %arg14[%c0_147, %c1_148, %c0_149, %c0_150] : memref<1x4x8x256xf32, #tpu.memory_space<vmem>>, vector<1x1x8x256xf32>
    %224 = vector.shape_cast %223 : vector<1x1x8x256xf32> to vector<8x256xf32>
    %225 = vector.shape_cast %222 : vector<8x256xf32> to vector<1x1x8x256xf32>
    tpu.vector_store %arg14[%c0_147, %c1_148, %c0_149, %c0_150], %225 {strides = array<i32>} : memref<1x4x8x256xf32, #tpu.memory_space<vmem>>, vector<1x1x8x256xf32>,
    %226 = vector.extract_strided_slice %143 {offsets = [0, 16], sizes = [12, 240], strides = [1, 1]} : vector<12x256xf32> to vector<12x240xf32>
    %227 = vector.extract_strided_slice %143 {offsets = [0, 0], sizes = [12, 16], strides = [1, 1]} : vector<12x256xf32> to vector<12x16xf32>
    %228 = tpu.concatenate %226, %227 in 1 : vector<12x240xf32>, vector<12x16xf32> -> vector<12x256xf32>
    %c2_151 = arith.constant 2 : index
    %c1_152 = arith.constant 1 : index
    %c0_153 = arith.constant 0 : index
    %c0_154 = arith.constant 0 : index
    %229 = vector.load %arg3[%c2_151, %c1_152, %c0_153, %c0_154] : memref<3x3x1x256xf32, #tpu.memory_space<vmem>>, vector<1x1x1x256xf32>
    %230 = vector.shape_cast %229 : vector<1x1x1x256xf32> to vector<1x256xf32>
    %231 = vector.broadcast %230 : vector<1x256xf32> to vector<12x256xf32>
    %232 = arith.mulf %228, %231 : vector<12x256xf32>
    %233 = arith.truncf %232 : vector<12x256xf32> to vector<12x256xbf16>
    %c0_155 = arith.constant 0 : index
    %c0_156 = arith.constant 0 : index
    %234 = vector.load %arg18[%c0_155, %c0_156] : memref<48x256xbf16, #tpu.memory_space<vmem>>, vector<12x256xbf16>
    tpu.vector_store %arg18[%c0_155, %c0_156], %233 {strides = array<i32>} : memref<48x256xbf16, #tpu.memory_space<vmem>>, vector<12x256xbf16>,
    %235 = vector.extract_strided_slice %143 {offsets = [0, 15], sizes = [12, 241], strides = [1, 1]} : vector<12x256xf32> to vector<12x241xf32>
    %236 = vector.extract_strided_slice %143 {offsets = [0, 0], sizes = [12, 15], strides = [1, 1]} : vector<12x256xf32> to vector<12x15xf32>
    %237 = tpu.concatenate %235, %236 in 1 : vector<12x241xf32>, vector<12x15xf32> -> vector<12x256xf32>
    %c2_157 = arith.constant 2 : index
    %c0_158 = arith.constant 0 : index
    %c0_159 = arith.constant 0 : index
    %c0_160 = arith.constant 0 : index
    %238 = vector.load %arg3[%c2_157, %c0_158, %c0_159, %c0_160] : memref<3x3x1x256xf32, #tpu.memory_space<vmem>>, vector<1x1x1x256xf32>
    %239 = vector.shape_cast %238 : vector<1x1x1x256xf32> to vector<1x256xf32>
    %240 = vector.broadcast %239 : vector<1x256xf32> to vector<12x256xf32>
    %241 = arith.mulf %237, %240 : vector<12x256xf32>
    %242 = arith.truncf %241 : vector<12x256xf32> to vector<12x256xbf16>
    %c12_161 = arith.constant 12 : index
    %c0_162 = arith.constant 0 : index
    %243 = vector.load %arg18[%c12_161, %c0_162] : memref<48x256xbf16, #tpu.memory_space<vmem>>, vector<12x256xbf16>
    tpu.vector_store %arg18[%c12_161, %c0_162], %242 {strides = array<i32>} : memref<48x256xbf16, #tpu.memory_space<vmem>>, vector<12x256xbf16>,
    %c24_163 = arith.constant 24 : index
    %c0_164 = arith.constant 0 : index
    %244 = vector.load %arg18[%c24_163, %c0_164] : memref<48x256xbf16, #tpu.memory_space<vmem>>, vector<12x256xbf16>
    tpu.vector_store %arg18[%c24_163, %c0_164], %145 {strides = array<i32>} : memref<48x256xbf16, #tpu.memory_space<vmem>>, vector<12x256xbf16>,
    %c36_165 = arith.constant 36 : index
    %c0_166 = arith.constant 0 : index
    %245 = vector.load %arg18[%c36_165, %c0_166] : memref<48x256xbf16, #tpu.memory_space<vmem>>, vector<12x256xbf16>
    tpu.vector_store %arg18[%c36_165, %c0_166], %154 {strides = array<i32>} : memref<48x256xbf16, #tpu.memory_space<vmem>>, vector<12x256xbf16>,
    %c2_167 = arith.constant 2 : index
    %c0_168 = arith.constant 0 : index
    %c0_169 = arith.constant 0 : index
    %246 = vector.load %arg12[%c2_167, %c0_168, %c0_169] : memref<4x8x48xbf16, #tpu.memory_space<vmem>>, vector<1x8x48xbf16>
    %247 = vector.shape_cast %246 : vector<1x8x48xbf16> to vector<8x48xbf16>
    %c0_170 = arith.constant 0 : index
    %c0_171 = arith.constant 0 : index
    %248 = vector.load %arg18[%c0_170, %c0_171] : memref<48x256xbf16, #tpu.memory_space<vmem>>, vector<48x256xbf16>
    %cst_172 = arith.constant dense<0.000000e+00> : vector<8x256xf32>
    %249 = tpu.matmul %247, %248, %cst_172 {dimension_numbers = #tpu.dot_dimension_numbers<[1], [0], [0], [1], [0, 0, 1, 1], [], []>} : vector<8x48xbf16>, vector<48x256xbf16>, vector<8x256xf32> -> vector<8x256xf32>
    %250 = vector.broadcast %144 : vector<8x1xf32> to vector<8x256xf32>
    %251 = arith.addf %249, %250 : vector<8x256xf32>
    %cst_173 = arith.constant 0.000000e+00 : f32
    %252 = vector.broadcast %cst_173 : f32 to vector<8x256xf32>
    %253 = arith.subf %252, %251 : vector<8x256xf32>
    %254 = math.exp %253 : vector<8x256xf32>
    %cst_174 = arith.constant 1.000000e+00 : f32
    %255 = vector.broadcast %cst_174 : f32 to vector<8x256xf32>
    %256 = arith.addf %255, %254 : vector<8x256xf32>
    %257 = tpu.reciprocal %256 {approx = true} : vector<8x256xf32> -> vector<8x256xf32>
    %258 = arith.mulf %251, %257 : vector<8x256xf32>
    %c0_175 = arith.constant 0 : index
    %c2_176 = arith.constant 2 : index
    %c0_177 = arith.constant 0 : index
    %c0_178 = arith.constant 0 : index
    %259 = vector.load %arg14[%c0_175, %c2_176, %c0_177, %c0_178] : memref<1x4x8x256xf32, #tpu.memory_space<vmem>>, vector<1x1x8x256xf32>
    %260 = vector.shape_cast %259 : vector<1x1x8x256xf32> to vector<8x256xf32>
    %261 = vector.shape_cast %258 : vector<8x256xf32> to vector<1x1x8x256xf32>
    tpu.vector_store %arg14[%c0_175, %c2_176, %c0_177, %c0_178], %261 {strides = array<i32>} : memref<1x4x8x256xf32, #tpu.memory_space<vmem>>, vector<1x1x8x256xf32>,
    %262 = vector.extract_strided_slice %143 {offsets = [0, 17], sizes = [12, 239], strides = [1, 1]} : vector<12x256xf32> to vector<12x239xf32>
    %263 = vector.extract_strided_slice %143 {offsets = [0, 0], sizes = [12, 17], strides = [1, 1]} : vector<12x256xf32> to vector<12x17xf32>
    %264 = tpu.concatenate %262, %263 in 1 : vector<12x239xf32>, vector<12x17xf32> -> vector<12x256xf32>
    %c2_179 = arith.constant 2 : index
    %c2_180 = arith.constant 2 : index
    %c0_181 = arith.constant 0 : index
    %c0_182 = arith.constant 0 : index
    %265 = vector.load %arg3[%c2_179, %c2_180, %c0_181, %c0_182] : memref<3x3x1x256xf32, #tpu.memory_space<vmem>>, vector<1x1x1x256xf32>
    %266 = vector.shape_cast %265 : vector<1x1x1x256xf32> to vector<1x256xf32>
    %267 = vector.broadcast %266 : vector<1x256xf32> to vector<12x256xf32>
    %268 = arith.mulf %264, %267 : vector<12x256xf32>
    %269 = arith.truncf %268 : vector<12x256xf32> to vector<12x256xbf16>
    %c0_183 = arith.constant 0 : index
    %c0_184 = arith.constant 0 : index
    %270 = vector.load %arg18[%c0_183, %c0_184] : memref<48x256xbf16, #tpu.memory_space<vmem>>, vector<12x256xbf16>
    tpu.vector_store %arg18[%c0_183, %c0_184], %269 {strides = array<i32>} : memref<48x256xbf16, #tpu.memory_space<vmem>>, vector<12x256xbf16>,
    %c12_185 = arith.constant 12 : index
    %c0_186 = arith.constant 0 : index
    %271 = vector.load %arg18[%c12_185, %c0_186] : memref<48x256xbf16, #tpu.memory_space<vmem>>, vector<12x256xbf16>
    tpu.vector_store %arg18[%c12_185, %c0_186], %233 {strides = array<i32>} : memref<48x256xbf16, #tpu.memory_space<vmem>>, vector<12x256xbf16>,
    %c24_187 = arith.constant 24 : index
    %c0_188 = arith.constant 0 : index
    %272 = vector.load %arg18[%c24_187, %c0_188] : memref<48x256xbf16, #tpu.memory_space<vmem>>, vector<12x256xbf16>
    tpu.vector_store %arg18[%c24_187, %c0_188], %197 {strides = array<i32>} : memref<48x256xbf16, #tpu.memory_space<vmem>>, vector<12x256xbf16>,
    %c36_189 = arith.constant 36 : index
    %c0_190 = arith.constant 0 : index
    %273 = vector.load %arg18[%c36_189, %c0_190] : memref<48x256xbf16, #tpu.memory_space<vmem>>, vector<12x256xbf16>
    tpu.vector_store %arg18[%c36_189, %c0_190], %145 {strides = array<i32>} : memref<48x256xbf16, #tpu.memory_space<vmem>>, vector<12x256xbf16>,
    %c3 = arith.constant 3 : index
    %c0_191 = arith.constant 0 : index
    %c0_192 = arith.constant 0 : index
    %274 = vector.load %arg12[%c3, %c0_191, %c0_192] : memref<4x8x48xbf16, #tpu.memory_space<vmem>>, vector<1x8x48xbf16>
    %275 = vector.shape_cast %274 : vector<1x8x48xbf16> to vector<8x48xbf16>
    %c0_193 = arith.constant 0 : index
    %c0_194 = arith.constant 0 : index
    %276 = vector.load %arg18[%c0_193, %c0_194] : memref<48x256xbf16, #tpu.memory_space<vmem>>, vector<48x256xbf16>
    %cst_195 = arith.constant dense<0.000000e+00> : vector<8x256xf32>
    %277 = tpu.matmul %275, %276, %cst_195 {dimension_numbers = #tpu.dot_dimension_numbers<[1], [0], [0], [1], [0, 0, 1, 1], [], []>} : vector<8x48xbf16>, vector<48x256xbf16>, vector<8x256xf32> -> vector<8x256xf32>
    %278 = vector.broadcast %144 : vector<8x1xf32> to vector<8x256xf32>
    %279 = arith.addf %277, %278 : vector<8x256xf32>
    %cst_196 = arith.constant 0.000000e+00 : f32
    %280 = vector.broadcast %cst_196 : f32 to vector<8x256xf32>
    %281 = arith.subf %280, %279 : vector<8x256xf32>
    %282 = math.exp %281 : vector<8x256xf32>
    %cst_197 = arith.constant 1.000000e+00 : f32
    %283 = vector.broadcast %cst_197 : f32 to vector<8x256xf32>
    %284 = arith.addf %283, %282 : vector<8x256xf32>
    %285 = tpu.reciprocal %284 {approx = true} : vector<8x256xf32> -> vector<8x256xf32>
    %286 = arith.mulf %279, %285 : vector<8x256xf32>
    %c0_198 = arith.constant 0 : index
    %c3_199 = arith.constant 3 : index
    %c0_200 = arith.constant 0 : index
    %c0_201 = arith.constant 0 : index
    %287 = vector.load %arg14[%c0_198, %c3_199, %c0_200, %c0_201] : memref<1x4x8x256xf32, #tpu.memory_space<vmem>>, vector<1x1x8x256xf32>
    %288 = vector.shape_cast %287 : vector<1x1x8x256xf32> to vector<8x256xf32>
    %289 = vector.shape_cast %286 : vector<8x256xf32> to vector<1x1x8x256xf32>
    tpu.vector_store %arg14[%c0_198, %c3_199, %c0_200, %c0_201], %289 {strides = array<i32>} : memref<1x4x8x256xf32, #tpu.memory_space<vmem>>, vector<1x1x8x256xf32>,
    return
  }
  func.func @transform_0(%arg0: i32) -> (i32, i32, i32) {
    %c0_i32 = arith.constant 0 : i32
    %c0_i32_0 = arith.constant 0 : i32
    %c0_i32_1 = arith.constant 0 : i32
    return %arg0, %c0_i32, %c0_i32_0 : i32, i32, i32
  }
  func.func @transform_1(%arg0: i32) -> (i32, i32, i32) {
    %c0_i32 = arith.constant 0 : i32
    %c0_i32_0 = arith.constant 0 : i32
    %c0_i32_1 = arith.constant 0 : i32
    return %arg0, %c0_i32, %c0_i32_0 : i32, i32, i32
  }
  func.func @transform_2(%arg0: i32) -> (i32, i32, i32, i32) {
    %c0_i32 = arith.constant 0 : i32
    %c0_i32_0 = arith.constant 0 : i32
    %c0_i32_1 = arith.constant 0 : i32
    %c0_i32_2 = arith.constant 0 : i32
    %c0_i32_3 = arith.constant 0 : i32
    return %c0_i32, %c0_i32_0, %c0_i32_1, %c0_i32_2 : i32, i32, i32, i32
  }
  func.func @transform_3(%arg0: i32) -> (i32, i32) {
    %c0_i32 = arith.constant 0 : i32
    %c0_i32_0 = arith.constant 0 : i32
    %c0_i32_1 = arith.constant 0 : i32
    return %c0_i32, %c0_i32_0 : i32, i32
  }
  func.func @transform_4(%arg0: i32) -> (i32, i32) {
    %c0_i32 = arith.constant 0 : i32
    %c0_i32_0 = arith.constant 0 : i32
    %c0_i32_1 = arith.constant 0 : i32
    return %c0_i32, %c0_i32_0 : i32, i32
  }
  func.func @transform_5(%arg0: i32) -> (i32, i32, i32) {
    %c0_i32 = arith.constant 0 : i32
    %c0_i32_0 = arith.constant 0 : i32
    %c0_i32_1 = arith.constant 0 : i32
    %c0_i32_2 = arith.constant 0 : i32
    return %c0_i32, %c0_i32_0, %c0_i32_1 : i32, i32, i32
  }
  func.func @transform_6(%arg0: i32) -> (i32, i32, i32) {
    %c0_i32 = arith.constant 0 : i32
    %c0_i32_0 = arith.constant 0 : i32
    %c0_i32_1 = arith.constant 0 : i32
    %c0_i32_2 = arith.constant 0 : i32
    return %c0_i32, %c0_i32_0, %c0_i32_1 : i32, i32, i32
  }
  func.func @transform_7(%arg0: i32) -> (i32, i32, i32) {
    %c0_i32 = arith.constant 0 : i32
    %c0_i32_0 = arith.constant 0 : i32
    %c0_i32_1 = arith.constant 0 : i32
    %c0_i32_2 = arith.constant 0 : i32
    return %c0_i32, %c0_i32_0, %c0_i32_1 : i32, i32, i32
  }
  func.func @transform_8(%arg0: i32) -> (i32, i32, i32) {
    %c0_i32 = arith.constant 0 : i32
    %c0_i32_0 = arith.constant 0 : i32
    %c0_i32_1 = arith.constant 0 : i32
    %c0_i32_2 = arith.constant 0 : i32
    return %c0_i32, %c0_i32_0, %c0_i32_1 : i32, i32, i32
  }
  func.func @transform_9(%arg0: i32) -> (i32, i32) {
    %c0_i32 = arith.constant 0 : i32
    %c0_i32_0 = arith.constant 0 : i32
    %c0_i32_1 = arith.constant 0 : i32
    return %c0_i32, %c0_i32_0 : i32, i32
  }
  func.func @transform_10(%arg0: i32) -> (i32, i32) {
    %c0_i32 = arith.constant 0 : i32
    %c0_i32_0 = arith.constant 0 : i32
    %c0_i32_1 = arith.constant 0 : i32
    return %c0_i32, %c0_i32_0 : i32, i32
  }
  func.func @transform_11(%arg0: i32) -> (i32, i32, i32) {
    %c0_i32 = arith.constant 0 : i32
    %c0_i32_0 = arith.constant 0 : i32
    %c0_i32_1 = arith.constant 0 : i32
    %c0_i32_2 = arith.constant 0 : i32
    return %c0_i32, %c0_i32_0, %c0_i32_1 : i32, i32, i32
  }
  func.func @transform_12(%arg0: i32) -> (i32, i32) {
    %c0_i32 = arith.constant 0 : i32
    %c0_i32_0 = arith.constant 0 : i32
    %c0_i32_1 = arith.constant 0 : i32
    return %c0_i32, %c0_i32_0 : i32, i32
  }
  func.func @transform_13(%arg0: i32) -> (i32, i32, i32, i32) {
    %c0_i32 = arith.constant 0 : i32
    %c0_i32_0 = arith.constant 0 : i32
    %c0_i32_1 = arith.constant 0 : i32
    %c0_i32_2 = arith.constant 0 : i32
    return %arg0, %c0_i32, %c0_i32_0, %c0_i32_1 : i32, i32, i32, i32
  }
}

</mosaic_0001>

<llo_original>
// kernel: tpu_custom_call.1
$region0: #{tpu_custom_call.1}
  #allocation0 [shape = 'u32[]', space=smem, size = 0x4, offset = 0x4, fixed_abs, tag = 'smem constant byte address 0x4 - core index']
  #allocation1 [shape = 'u32[144,128]{1,0:T(1,128)}', space=vmem, size = 0x12000, scoped, tag = 'internal scratch']
  #allocation2 [shape = 'bf16[8,256]{1,0:T(8,128)(2,1)}', space=vmem, size = 0x1000, scoped, tag = 'scratch operand']
  #allocation3 [shape = 'f32[12,256]{1,0:T(8,128)}', space=vmem, size = 0x4000, scoped, tag = 'scratch operand']
  #allocation4 [shape = 'bf16[36,256]{1,0:T(8,128)(2,1)}', space=vmem, size = 0x5000, scoped, tag = 'scratch operand']
  #allocation5 [shape = 'bf16[48,256]{1,0:T(8,128)(2,1)}', space=vmem, size = 0x6000, scoped, tag = 'scratch operand']
  %s0 = inlined_call_operand.hbm [shape: f32[2,4,256], index: 0, kind: input, shape index: {}]
  %s1 = inlined_call_operand.vmem [shape: f32[2,8,256], index: 1, kind: input, shape index: {}]
  %s2 = inlined_call_operand.hbm [shape: f32[3,3,1,256], index: 2, kind: input, shape index: {}]
  %s3 = inlined_call_operand.hbm [shape: bf16[8,8], index: 3, kind: input, shape index: {}]
  %s4 = inlined_call_operand.vmem [shape: f32[8,1], index: 4, kind: input, shape index: {}]
  %s5 = inlined_call_operand.hbm [shape: bf16[1,4,4], index: 5, kind: input, shape index: {}]
  %s6 = inlined_call_operand.vmem [shape: f32[1,4,1], index: 6, kind: input, shape index: {}]
  %s7 = inlined_call_operand.hbm [shape: bf16[1,4,36], index: 7, kind: input, shape index: {}]
  %s8 = inlined_call_operand.vmem [shape: f32[1,4,1], index: 8, kind: input, shape index: {}]
  %s9 = inlined_call_operand.vmem [shape: bf16[8,8], index: 9, kind: input, shape index: {}]
  %s10 = inlined_call_operand.vmem [shape: f32[8,1], index: 10, kind: input, shape index: {}]
  %s11 = inlined_call_operand.vmem [shape: bf16[4,8,48], index: 11, kind: input, shape index: {}]
  %s12 = inlined_call_operand.vmem [shape: f32[8,1], index: 12, kind: input, shape index: {}]
  %s13 = inlined_call_operand.hbm [shape: f32[2,4,8,256], index: 13, kind: output, shape index: {}]
  %s14 = sld [smem:[#allocation0]]
  $region105: #{tpu_custom_call.1} parent=0
    _
  %s16 = ssub.s32 1, %s14
  %s17 = scalar_select 0, %s16, %s14
  $region1: #{tpu_custom_call.1} parent=0
    #allocation6 [shape = 'u8[8192]{0}', space=vmem, size = 0x2000, scoped, tag = 'input window, operand 0']
    #allocation7 [shape = 's32[2]{0}', space=sflag, size = 0x8, scoped, tag = 'scoped memory for tpu_custom_call.1']
    #allocation8 [shape = 's32[2]{0}', space=sflag, size = 0x8, scoped, tag = 'scoped memory for tpu_custom_call.1']
    #allocation9 [shape = 'u8[9216]{0}', space=vmem, size = 0x2400, scoped, tag = 'input window, operand 2, single buffered']
    #allocation10 [shape = 's32[1]{0}', space=sflag, size = 0x4, scoped, tag = 'scoped memory for tpu_custom_call.1']
    #allocation11 [shape = 'u8[2048]{0}', space=vmem, size = 0x800, scoped, tag = 'input window, operand 3, single buffered']
    #allocation12 [shape = 'u8[1024]{0}', space=vmem, size = 0x400, scoped, tag = 'input window, operand 5, single buffered']
    #allocation13 [shape = 's32[1]{0}', space=sflag, size = 0x4, scoped, tag = 'scoped memory for tpu_custom_call.1']
    #allocation14 [shape = 'u8[1024]{0}', space=vmem, size = 0x400, scoped, tag = 'input window, operand 7, single buffered']
    #allocation15 [shape = 'u8[65536]{0}', space=vmem, size = 0x10000, scoped, tag = 'output window, operand 0']
    %18 = vsyncpa [#allocation7], 0
    %s19 = scalar_lea.sflag [#allocation7], 1
    %20 = vsyncpa %s19, 0
    %21 = vsyncpa [#allocation10], 0
    %22 = vsyncpa [#allocation13], 0
    %23 = vsyncpa [#allocation8], 0
    %s24 = scalar_lea.sflag [#allocation8], 1
    %25 = vsyncpa %s24, 0
    loop: start=0, step=1, limit=4
    $region2: #{tpu_custom_call.1} parent=1 // loop_pre_header
      _
    $region3: #{tpu_custom_call.1} parent=1 // loop_header
      %s27 = sphi 0, %s31
      %p28 = scmp.ge.s32.totalorder %s27, 4
      %s37 = sphi 0, %s39
      %s40 = sphi 0, %s37
      %s41 = sphi 0, %s40
      %s57 = sphi 0, %s41
      %s63 = sphi 0, %s65
      %s66 = sphi 0, %s63
      %s67 = sphi 0, %s66
      %s83 = sphi 0, %s67
      %s87 = sphi 0, %s87
      %s89 = sphi 0, %s87
      %s90 = sphi 0, %s89
      %s104 = sphi 0, %s90
      %s108 = sphi 0, %s108
      %s110 = sphi 0, %s108
      %s111 = sphi 0, %s110
      %s125 = sphi 0, %s111
      %s129 = sphi 0, %s129
      %s131 = sphi 0, %s129
      %s132 = sphi 0, %s131
      %s146 = sphi 0, %s132
      %s150 = sphi 0, %s150
      %s152 = sphi 0, %s150
      %s153 = sphi 0, %s152
      %s167 = sphi 0, %s153
      %s171 = sphi 0, %s171
      %s173 = sphi 0, %s171
      %s174 = sphi 0, %s173
      %s188 = sphi 0, %s174
      %s192 = sphi 0, %s192
      %s194 = sphi 0, %s192
      %s195 = sphi 0, %s194
      %s209 = sphi 0, %s195
      %s213 = sphi 0, %s213
      %s215 = sphi 0, %s213
      %s216 = sphi 0, %s215
      %s230 = sphi 0, %s216
      %s234 = sphi 0, %s234
      %s236 = sphi 0, %s234
      %s237 = sphi 0, %s236
      %s251 = sphi 0, %s237
      %s255 = sphi 0, %s255
      %s257 = sphi 0, %s255
      %s258 = sphi 0, %s257
      %s272 = sphi 0, %s258
      %s276 = sphi 0, %s276
      %s278 = sphi 0, %s276
      %s279 = sphi 0, %s278
      %s293 = sphi 0, %s279
      %s297 = sphi 0, %s297
      %s299 = sphi 0, %s297
      %s300 = sphi 0, %s299
      %s314 = sphi 0, %s300
      %s320 = sphi 0, %s322
      %s323 = sphi 0, %s320
      %s324 = sphi 0, %s323
      %s340 = sphi 0, %s324
    $region4: #{tpu_custom_call.1} parent=1 // loop_header_branch
      %30 = sbr.rel (%p28) target = $region8
    $region5: #{tpu_custom_call.1} parent=1 // loop_body
      %s32 = ssub.s32 %s27, 1
      %s33 = ssub.s32 %s27, 2
      %s34 = sadd.s32 %s27, 1
      %s35 = ssub.s32 %s27, %s34
      %p36 = scmp.eq.s32.totalorder %s35, 0
      %s38 = sadd.s32 %s37, 1
      %s39 = scalar_select %p36, %s37, %s38
      %p42 = pneg %p36
      %p43 = scmp.eq.s32.totalorder %s27, 1
      %p44 = por %p42, %p43
      %p45 = scmp.ne.s32.totalorder %s37, %s40
      %p46 = scmp.eq.s32.totalorder %s27, 0
      %p47 = por %p45, %p46
      %p48 = scmp.ne.s32.totalorder %s37, %s40
      %p49 = scmp.eq.s32.totalorder %s32, 1
      %p50 = por %p48, %p49
      %p51 = scmp.ne.s32.totalorder %s40, %s41
      %p52 = scmp.eq.s32.totalorder %s32, 0
      %p53 = por %p51, %p52
      %p54 = scmp.ne.s32.totalorder %s40, %s41
      %p55 = scmp.eq.s32.totalorder %s33, 1
      %p56 = por %p54, %p55
      %p58 = scmp.ne.s32.totalorder %s41, %s57
      %p59 = scmp.eq.s32.totalorder %s33, 0
      %p60 = por %p58, %p59
      %s61 = ssub.s32 %s27, %s34
      %p62 = scmp.eq.s32.totalorder %s61, 0
      %s64 = sadd.s32 %s63, 1
      %s65 = scalar_select %p62, %s63, %s64
      %p68 = pneg %p62
      %p69 = scmp.eq.s32.totalorder %s27, 1
      %p70 = por %p68, %p69
      %p71 = scmp.ne.s32.totalorder %s63, %s66
      %p72 = scmp.eq.s32.totalorder %s27, 0
      %p73 = por %p71, %p72
      %p74 = scmp.ne.s32.totalorder %s63, %s66
      %p75 = scmp.eq.s32.totalorder %s32, 1
      %p76 = por %p74, %p75
      %p77 = scmp.ne.s32.totalorder %s66, %s67
      %p78 = scmp.eq.s32.totalorder %s32, 0
      %p79 = por %p77, %p78
      %p80 = scmp.ne.s32.totalorder %s66, %s67
      %p81 = scmp.eq.s32.totalorder %s33, 1
      %p82 = por %p80, %p81
      %p84 = scmp.ne.s32.totalorder %s67, %s83
      %p85 = scmp.eq.s32.totalorder %s33, 0
      %p86 = por %p84, %p85
      %s88 = sadd.s32 %s87, 1
      %p91 = scmp.eq.s32.totalorder %s27, 1
      %p92 = scmp.ne.s32.totalorder %s87, %s89
      %p93 = scmp.eq.s32.totalorder %s27, 0
      %p94 = por %p92, %p93
      %p95 = scmp.ne.s32.totalorder %s87, %s89
      %p96 = scmp.eq.s32.totalorder %s32, 1
      %p97 = por %p95, %p96
      %p98 = scmp.ne.s32.totalorder %s89, %s90
      %p99 = scmp.eq.s32.totalorder %s32, 0
      %p100 = por %p98, %p99
      %p101 = scmp.ne.s32.totalorder %s89, %s90
      %p102 = scmp.eq.s32.totalorder %s33, 1
      %p103 = por %p101, %p102
      %p105 = scmp.ne.s32.totalorder %s90, %s104
      %p106 = scmp.eq.s32.totalorder %s33, 0
      %p107 = por %p105, %p106
      %s109 = sadd.s32 %s108, 1
      %p112 = scmp.eq.s32.totalorder %s27, 1
      %p113 = scmp.ne.s32.totalorder %s108, %s110
      %p114 = scmp.eq.s32.totalorder %s27, 0
      %p115 = por %p113, %p114
      %p116 = scmp.ne.s32.totalorder %s108, %s110
      %p117 = scmp.eq.s32.totalorder %s32, 1
      %p118 = por %p116, %p117
      %p119 = scmp.ne.s32.totalorder %s110, %s111
      %p120 = scmp.eq.s32.totalorder %s32, 0
      %p121 = por %p119, %p120
      %p122 = scmp.ne.s32.totalorder %s110, %s111
      %p123 = scmp.eq.s32.totalorder %s33, 1
      %p124 = por %p122, %p123
      %p126 = scmp.ne.s32.totalorder %s111, %s125
      %p127 = scmp.eq.s32.totalorder %s33, 0
      %p128 = por %p126, %p127
      %s130 = sadd.s32 %s129, 1
      %p133 = scmp.eq.s32.totalorder %s27, 1
      %p134 = scmp.ne.s32.totalorder %s129, %s131
      %p135 = scmp.eq.s32.totalorder %s27, 0
      %p136 = por %p134, %p135
      %p137 = scmp.ne.s32.totalorder %s129, %s131
      %p138 = scmp.eq.s32.totalorder %s32, 1
      %p139 = por %p137, %p138
      %p140 = scmp.ne.s32.totalorder %s131, %s132
      %p141 = scmp.eq.s32.totalorder %s32, 0
      %p142 = por %p140, %p141
      %p143 = scmp.ne.s32.totalorder %s131, %s132
      %p144 = scmp.eq.s32.totalorder %s33, 1
      %p145 = por %p143, %p144
      %p147 = scmp.ne.s32.totalorder %s132, %s146
      %p148 = scmp.eq.s32.totalorder %s33, 0
      %p149 = por %p147, %p148
      %s151 = sadd.s32 %s150, 1
      %p154 = scmp.eq.s32.totalorder %s27, 1
      %p155 = scmp.ne.s32.totalorder %s150, %s152
      %p156 = scmp.eq.s32.totalorder %s27, 0
      %p157 = por %p155, %p156
      %p158 = scmp.ne.s32.totalorder %s150, %s152
      %p159 = scmp.eq.s32.totalorder %s32, 1
      %p160 = por %p158, %p159
      %p161 = scmp.ne.s32.totalorder %s152, %s153
      %p162 = scmp.eq.s32.totalorder %s32, 0
      %p163 = por %p161, %p162
      %p164 = scmp.ne.s32.totalorder %s152, %s153
      %p165 = scmp.eq.s32.totalorder %s33, 1
      %p166 = por %p164, %p165
      %p168 = scmp.ne.s32.totalorder %s153, %s167
      %p169 = scmp.eq.s32.totalorder %s33, 0
      %p170 = por %p168, %p169
      %s172 = sadd.s32 %s171, 1
      %p175 = scmp.eq.s32.totalorder %s27, 1
      %p176 = scmp.ne.s32.totalorder %s171, %s173
      %p177 = scmp.eq.s32.totalorder %s27, 0
      %p178 = por %p176, %p177
      %p179 = scmp.ne.s32.totalorder %s171, %s173
      %p180 = scmp.eq.s32.totalorder %s32, 1
      %p181 = por %p179, %p180
      %p182 = scmp.ne.s32.totalorder %s173, %s174
      %p183 = scmp.eq.s32.totalorder %s32, 0
      %p184 = por %p182, %p183
      %p185 = scmp.ne.s32.totalorder %s173, %s174
      %p186 = scmp.eq.s32.totalorder %s33, 1
      %p187 = por %p185, %p186
      %p189 = scmp.ne.s32.totalorder %s174, %s188
      %p190 = scmp.eq.s32.totalorder %s33, 0
      %p191 = por %p189, %p190
      %s193 = sadd.s32 %s192, 1
      %p196 = scmp.eq.s32.totalorder %s27, 1
      %p197 = scmp.ne.s32.totalorder %s192, %s194
      %p198 = scmp.eq.s32.totalorder %s27, 0
      %p199 = por %p197, %p198
      %p200 = scmp.ne.s32.totalorder %s192, %s194
      %p201 = scmp.eq.s32.totalorder %s32, 1
      %p202 = por %p200, %p201
      %p203 = scmp.ne.s32.totalorder %s194, %s195
      %p204 = scmp.eq.s32.totalorder %s32, 0
      %p205 = por %p203, %p204
      %p206 = scmp.ne.s32.totalorder %s194, %s195
      %p207 = scmp.eq.s32.totalorder %s33, 1
      %p208 = por %p206, %p207
      %p210 = scmp.ne.s32.totalorder %s195, %s209
      %p211 = scmp.eq.s32.totalorder %s33, 0
      %p212 = por %p210, %p211
      %s214 = sadd.s32 %s213, 1
      %p217 = scmp.eq.s32.totalorder %s27, 1
      %p218 = scmp.ne.s32.totalorder %s213, %s215
      %p219 = scmp.eq.s32.totalorder %s27, 0
      %p220 = por %p218, %p219
      %p221 = scmp.ne.s32.totalorder %s213, %s215
      %p222 = scmp.eq.s32.totalorder %s32, 1
      %p223 = por %p221, %p222
      %p224 = scmp.ne.s32.totalorder %s215, %s216
      %p225 = scmp.eq.s32.totalorder %s32, 0
      %p226 = por %p224, %p225
      %p227 = scmp.ne.s32.totalorder %s215, %s216
      %p228 = scmp.eq.s32.totalorder %s33, 1
      %p229 = por %p227, %p228
      %p231 = scmp.ne.s32.totalorder %s216, %s230
      %p232 = scmp.eq.s32.totalorder %s33, 0
      %p233 = por %p231, %p232
      %s235 = sadd.s32 %s234, 1
      %p238 = scmp.eq.s32.totalorder %s27, 1
      %p239 = scmp.ne.s32.totalorder %s234, %s236
      %p240 = scmp.eq.s32.totalorder %s27, 0
      %p241 = por %p239, %p240
      %p242 = scmp.ne.s32.totalorder %s234, %s236
      %p243 = scmp.eq.s32.totalorder %s32, 1
      %p244 = por %p242, %p243
      %p245 = scmp.ne.s32.totalorder %s236, %s237
      %p246 = scmp.eq.s32.totalorder %s32, 0
      %p247 = por %p245, %p246
      %p248 = scmp.ne.s32.totalorder %s236, %s237
      %p249 = scmp.eq.s32.totalorder %s33, 1
      %p250 = por %p248, %p249
      %p252 = scmp.ne.s32.totalorder %s237, %s251
      %p253 = scmp.eq.s32.totalorder %s33, 0
      %p254 = por %p252, %p253
      %s256 = sadd.s32 %s255, 1
      %p259 = scmp.eq.s32.totalorder %s27, 1
      %p260 = scmp.ne.s32.totalorder %s255, %s257
      %p261 = scmp.eq.s32.totalorder %s27, 0
      %p262 = por %p260, %p261
      %p263 = scmp.ne.s32.totalorder %s255, %s257
      %p264 = scmp.eq.s32.totalorder %s32, 1
      %p265 = por %p263, %p264
      %p266 = scmp.ne.s32.totalorder %s257, %s258
      %p267 = scmp.eq.s32.totalorder %s32, 0
      %p268 = por %p266, %p267
      %p269 = scmp.ne.s32.totalorder %s257, %s258
      %p270 = scmp.eq.s32.totalorder %s33, 1
      %p271 = por %p269, %p270
      %p273 = scmp.ne.s32.totalorder %s258, %s272
      %p274 = scmp.eq.s32.totalorder %s33, 0
      %p275 = por %p273, %p274
      %s277 = sadd.s32 %s276, 1
      %p280 = scmp.eq.s32.totalorder %s27, 1
      %p281 = scmp.ne.s32.totalorder %s276, %s278
      %p282 = scmp.eq.s32.totalorder %s27, 0
      %p283 = por %p281, %p282
      %p284 = scmp.ne.s32.totalorder %s276, %s278
      %p285 = scmp.eq.s32.totalorder %s32, 1
      %p286 = por %p284, %p285
      %p287 = scmp.ne.s32.totalorder %s278, %s279
      %p288 = scmp.eq.s32.totalorder %s32, 0
      %p289 = por %p287, %p288
      %p290 = scmp.ne.s32.totalorder %s278, %s279
      %p291 = scmp.eq.s32.totalorder %s33, 1
      %p292 = por %p290, %p291
      %p294 = scmp.ne.s32.totalorder %s279, %s293
      %p295 = scmp.eq.s32.totalorder %s33, 0
      %p296 = por %p294, %p295
      %s298 = sadd.s32 %s297, 1
      %p301 = scmp.eq.s32.totalorder %s27, 1
      %p302 = scmp.ne.s32.totalorder %s297, %s299
      %p303 = scmp.eq.s32.totalorder %s27, 0
      %p304 = por %p302, %p303
      %p305 = scmp.ne.s32.totalorder %s297, %s299
      %p306 = scmp.eq.s32.totalorder %s32, 1
      %p307 = por %p305, %p306
      %p308 = scmp.ne.s32.totalorder %s299, %s300
      %p309 = scmp.eq.s32.totalorder %s32, 0
      %p310 = por %p308, %p309
      %p311 = scmp.ne.s32.totalorder %s299, %s300
      %p312 = scmp.eq.s32.totalorder %s33, 1
      %p313 = por %p311, %p312
      %p315 = scmp.ne.s32.totalorder %s300, %s314
      %p316 = scmp.eq.s32.totalorder %s33, 0
      %p317 = por %p315, %p316
      %s318 = ssub.s32 %s27, %s34
      %p319 = scmp.eq.s32.totalorder %s318, 0
      %s321 = sadd.s32 %s320, 1
      %s322 = scalar_select %p319, %s320, %s321
      %p325 = pneg %p319
      %p326 = scmp.eq.s32.totalorder %s27, 1
      %p327 = por %p325, %p326
      %p328 = scmp.ne.s32.totalorder %s320, %s323
      %p329 = scmp.eq.s32.totalorder %s27, 0
      %p330 = por %p328, %p329
      %p331 = scmp.ne.s32.totalorder %s320, %s323
      %p332 = scmp.eq.s32.totalorder %s32, 1
      %p333 = por %p331, %p332
      %p334 = scmp.ne.s32.totalorder %s323, %s324
      %p335 = scmp.eq.s32.totalorder %s32, 0
      %p336 = por %p334, %p335
      %p337 = scmp.ne.s32.totalorder %s323, %s324
      %p338 = scmp.eq.s32.totalorder %s33, 1
      %p339 = por %p337, %p338
      %p341 = scmp.ne.s32.totalorder %s324, %s340
      %p342 = scmp.eq.s32.totalorder %s33, 0
      %p343 = por %p341, %p342
      %p344 = scmp.le.s32.totalorder 1, %s27
      %p345 = scmp.lt.s32.totalorder %s27, 3
      %p346 = pnand %p344, %p345
      %p347 = pneg %p346
      // Predicated region
      $region9: #{tpu_custom_call.1} parent=5 // pred_check
        _
      $region10: #{tpu_custom_call.1} parent=5 // pred_check_branch
        %349 = sbr.rel (%p346) target = $region12
      $region11: #{tpu_custom_call.1} parent=5 // pred_region
        %s350 = ssub.s32 %s27, 1
        // Predicated region
        $region13: #{tpu_custom_call.1} parent=11 // pred_check
          %p351 = pneg %p100
        $region14: #{tpu_custom_call.1} parent=11 // pred_check_branch
          %353 = sbr.rel (%p351) target = $region16
        $region15: #{tpu_custom_call.1} parent=11 // pred_region
          %s355 = ssub.s32 288, 288
          %356 = vsyncadd [#allocation10], %s355
          %s357 = sshll.u32 [#allocation9], 4
          %s358 = int_to_ptr.vmem [resolvable:$true] %s357
          %363 = dma.hbm_to_vmem [thread:$0]  %s2, 288, %s358, [#allocation10], 32, 32, 2
        $region16: #{tpu_custom_call.1} parent=11 // pred_fallthru
          _
        // Predicated region
        $region17: #{tpu_custom_call.1} parent=11 // pred_check
          %p364 = pneg %p121
        $region18: #{tpu_custom_call.1} parent=11 // pred_check_branch
          %366 = sbr.rel (%p364) target = $region20
        $region19: #{tpu_custom_call.1} parent=11 // pred_region
          %s368 = ssub.s32 64, 64
          %369 = vsyncadd [#allocation10], %s368
          %s371 = sshll.u32 [#allocation11], 4
          %s372 = int_to_ptr.vmem [resolvable:$true] %s371
          %374 = dma.hbm_to_vmem [thread:$0]  %s3, 64, %s372, [#allocation10]
        $region20: #{tpu_custom_call.1} parent=11 // pred_fallthru
          _
        // Predicated region
        $region21: #{tpu_custom_call.1} parent=11 // pred_check
          %p375 = pneg %p142
        $region22: #{tpu_custom_call.1} parent=11 // pred_check_branch
          %377 = sbr.rel (%p375) target = $region24
        $region23: #{tpu_custom_call.1} parent=11 // pred_region
          _
        $region24: #{tpu_custom_call.1} parent=11 // pred_fallthru
          _
        // Predicated region
        $region25: #{tpu_custom_call.1} parent=11 // pred_check
          %p378 = pneg %p163
        $region26: #{tpu_custom_call.1} parent=11 // pred_check_branch
          %380 = sbr.rel (%p378) target = $region28
        $region27: #{tpu_custom_call.1} parent=11 // pred_region
          %s382 = ssub.s32 32, 32
          %383 = vsyncadd [#allocation13], %s382
          %s385 = sshll.u32 [#allocation12], 4
          %s386 = int_to_ptr.vmem [resolvable:$true] %s385
          %388 = dma.hbm_to_vmem [thread:$0]  %s5, 32, %s386, [#allocation13]
        $region28: #{tpu_custom_call.1} parent=11 // pred_fallthru
          _
        // Predicated region
        $region29: #{tpu_custom_call.1} parent=11 // pred_check
          %p389 = pneg %p184
        $region30: #{tpu_custom_call.1} parent=11 // pred_check_branch
          %391 = sbr.rel (%p389) target = $region32
        $region31: #{tpu_custom_call.1} parent=11 // pred_region
          _
        $region32: #{tpu_custom_call.1} parent=11 // pred_fallthru
          _
        // Predicated region
        $region33: #{tpu_custom_call.1} parent=11 // pred_check
          %p392 = pneg %p205
        $region34: #{tpu_custom_call.1} parent=11 // pred_check_branch
          %394 = sbr.rel (%p392) target = $region36
        $region35: #{tpu_custom_call.1} parent=11 // pred_region
          %s396 = ssub.s32 32, 32
          %397 = vsyncadd [#allocation13], %s396
          %s399 = sshll.u32 [#allocation14], 4
          %s400 = int_to_ptr.vmem [resolvable:$true] %s399
          %402 = dma.hbm_to_vmem [thread:$0]  %s7, 32, %s400, [#allocation13]
        $region36: #{tpu_custom_call.1} parent=11 // pred_fallthru
          _
        // Predicated region
        $region37: #{tpu_custom_call.1} parent=11 // pred_check
          %p403 = pneg %p226
        $region38: #{tpu_custom_call.1} parent=11 // pred_check_branch
          %405 = sbr.rel (%p403) target = $region40
        $region39: #{tpu_custom_call.1} parent=11 // pred_region
          _
        $region40: #{tpu_custom_call.1} parent=11 // pred_fallthru
          _
        // Predicated region
        $region41: #{tpu_custom_call.1} parent=11 // pred_check
          %p406 = pneg %p247
        $region42: #{tpu_custom_call.1} parent=11 // pred_check_branch
          %408 = sbr.rel (%p406) target = $region44
        $region43: #{tpu_custom_call.1} parent=11 // pred_region
          _
        $region44: #{tpu_custom_call.1} parent=11 // pred_fallthru
          _
        // Predicated region
        $region45: #{tpu_custom_call.1} parent=11 // pred_check
          %p409 = pneg %p268
        $region46: #{tpu_custom_call.1} parent=11 // pred_check_branch
          %411 = sbr.rel (%p409) target = $region48
        $region47: #{tpu_custom_call.1} parent=11 // pred_region
          _
        $region48: #{tpu_custom_call.1} parent=11 // pred_fallthru
          _
        // Predicated region
        $region49: #{tpu_custom_call.1} parent=11 // pred_check
          %p412 = pneg %p289
        $region50: #{tpu_custom_call.1} parent=11 // pred_check_branch
          %414 = sbr.rel (%p412) target = $region52
        $region51: #{tpu_custom_call.1} parent=11 // pred_region
          _
        $region52: #{tpu_custom_call.1} parent=11 // pred_fallthru
          _
        // Predicated region
        $region53: #{tpu_custom_call.1} parent=11 // pred_check
          %p415 = pneg %p310
        $region54: #{tpu_custom_call.1} parent=11 // pred_check_branch
          %417 = sbr.rel (%p415) target = $region56
        $region55: #{tpu_custom_call.1} parent=11 // pred_region
          _
        $region56: #{tpu_custom_call.1} parent=11 // pred_fallthru
          _
      $region12: #{tpu_custom_call.1} parent=5 // pred_fallthru
        _
      %p418 = scmp.lt.s32.totalorder %s27, 2
      // Predicated region
      $region57: #{tpu_custom_call.1} parent=5 // pred_check
        %p419 = pneg %p418
      $region58: #{tpu_custom_call.1} parent=5 // pred_check_branch
        %421 = sbr.rel (%p419) target = $region60
      $region59: #{tpu_custom_call.1} parent=5 // pred_region
        // Predicated region
        $region61: #{tpu_custom_call.1} parent=59 // pred_check
          %p422 = pneg %p47
        $region62: #{tpu_custom_call.1} parent=59 // pred_check_branch
          %424 = sbr.rel (%p422) target = $region64
        $region63: #{tpu_custom_call.1} parent=59 // pred_region
          %s425 = sand.u32 %s37, 1
          %s426 = scalar_lea.sflag [#allocation7], %s425
          %s427 = sand.u32 %s37, 1
          %s428 = smul.addr %s427, 8
          %s429 = scalar_lea.vmem [#allocation6], %s428
          %s431 = ssub.s32 128, 128
          %432 = vsyncadd %s426, %s431
          %s433 = smul.addr %s27, 2
          %s434 = smul.addr %s433, 64
          %s435 = scalar_lea.hbm %s0, %s434
          %s437 = sshll.u32 %s429, 4
          %s438 = int_to_ptr.vmem [resolvable:$true] %s437
          %440 = dma.hbm_to_vmem [thread:$0]  %s435, 128, %s438, %s426
        $region64: #{tpu_custom_call.1} parent=59 // pred_fallthru
          _
        // Predicated region
        $region65: #{tpu_custom_call.1} parent=59 // pred_check
          %p441 = pneg %p73
        $region66: #{tpu_custom_call.1} parent=59 // pred_check_branch
          %443 = sbr.rel (%p441) target = $region68
        $region67: #{tpu_custom_call.1} parent=59 // pred_region
          %p444 = scmp.lt.s32.totalorder %s27, 1
          %s445 = scalar_select %p444, %s27, 1
          %s446 = smul.addr %s445, 2
          %s447 = smul.addr %s446, 8
          %s448 = scalar_lea.vmem %s1, %s447
        $region68: #{tpu_custom_call.1} parent=59 // pred_fallthru
          _
      $region60: #{tpu_custom_call.1} parent=5 // pred_fallthru
        _
      %p449 = scmp.le.s32.totalorder 1, %s27
      %p450 = scmp.lt.s32.totalorder %s27, 3
      %p451 = pnand %p449, %p450
      %p452 = pneg %p451
      // Predicated region
      $region69: #{tpu_custom_call.1} parent=5 // pred_check
        _
      $region70: #{tpu_custom_call.1} parent=5 // pred_check_branch
        %454 = sbr.rel (%p451) target = $region72
      $region71: #{tpu_custom_call.1} parent=5 // pred_region
        %s455 = ssub.s32 %s27, 1
        %s456 = sand.u32 %s40, 1
        %s457 = scalar_lea.sflag [#allocation7], %s456
        %s458 = sand.u32 %s40, 1
        %s459 = smul.addr %s458, 8
        %s460 = scalar_lea.vmem [#allocation6], %s459
        // Predicated region
        $region73: #{tpu_custom_call.1} parent=71 // pred_check
          %p461 = pneg %p53
        $region74: #{tpu_custom_call.1} parent=71 // pred_check_branch
          %463 = sbr.rel (%p461) target = $region76
        $region75: #{tpu_custom_call.1} parent=71 // pred_region
          %464 = dma.done %s457, 128
        $region76: #{tpu_custom_call.1} parent=71 // pred_fallthru
          _
        // Predicated region
        $region77: #{tpu_custom_call.1} parent=71 // pred_check
          %p465 = pneg %p100
        $region78: #{tpu_custom_call.1} parent=71 // pred_check_branch
          %467 = sbr.rel (%p465) target = $region80
        $region79: #{tpu_custom_call.1} parent=71 // pred_region
          %468 = dma.done [#allocation10], 288
        $region80: #{tpu_custom_call.1} parent=71 // pred_fallthru
          _
        // Predicated region
        $region81: #{tpu_custom_call.1} parent=71 // pred_check
          %p469 = pneg %p121
        $region82: #{tpu_custom_call.1} parent=71 // pred_check_branch
          %471 = sbr.rel (%p469) target = $region84
        $region83: #{tpu_custom_call.1} parent=71 // pred_region
          %472 = dma.done [#allocation10], 64
        $region84: #{tpu_custom_call.1} parent=71 // pred_fallthru
          _
        // Predicated region
        $region85: #{tpu_custom_call.1} parent=71 // pred_check
          %p473 = pneg %p163
        $region86: #{tpu_custom_call.1} parent=71 // pred_check_branch
          %475 = sbr.rel (%p473) target = $region88
        $region87: #{tpu_custom_call.1} parent=71 // pred_region
          %476 = dma.done [#allocation13], 32
        $region88: #{tpu_custom_call.1} parent=71 // pred_fallthru
          _
        // Predicated region
        $region89: #{tpu_custom_call.1} parent=71 // pred_check
          %p477 = pneg %p205
        $region90: #{tpu_custom_call.1} parent=71 // pred_check_branch
          %479 = sbr.rel (%p477) target = $region92
        $region91: #{tpu_custom_call.1} parent=71 // pred_region
          %480 = dma.done [#allocation13], 32
        $region92: #{tpu_custom_call.1} parent=71 // pred_fallthru
          _
        %s481 = sand.u32 %s40, 1
        %s482 = scalar_lea.sflag [#allocation7], %s481
        %s483 = sand.u32 %s40, 1
        %s484 = smul.addr %s483, 8
        %s485 = scalar_lea.vmem [#allocation6], %s484
        %p486 = pneg %p53
        %p487 = pneg %p50
        %p488 = scmp.lt.s32.totalorder %s32, 1
        %s489 = scalar_select %p488, %s32, 1
        %s490 = smul.addr %s489, 2
        %s491 = smul.addr %s490, 8
        %s492 = scalar_lea.vmem %s1, %s491
        %p493 = pneg %p79
        %p494 = pneg %p76
        %p495 = pneg %p100
        %p496 = pneg %p97
        %p497 = pneg %p121
        %p498 = pneg %p118
        %p499 = pneg %p142
        %p500 = pneg %p139
        %p501 = pneg %p163
        %p502 = pneg %p160
        %p503 = pneg %p184
        %p504 = pneg %p181
        %p505 = pneg %p205
        %p506 = pneg %p202
        %p507 = pneg %p226
        %p508 = pneg %p223
        %p509 = pneg %p247
        %p510 = pneg %p244
        %p511 = pneg %p268
        %p512 = pneg %p265
        %p513 = pneg %p289
        %p514 = pneg %p286
        %p515 = pneg %p310
        %p516 = pneg %p307
        %p517 = pneg %p336
        %p518 = pneg %p333
        %s519 = sand.u32 %s323, 1
        %s520 = scalar_lea.sflag [#allocation8], %s519
        %s521 = sand.u32 %s323, 1
        %s522 = smul.addr %s521, 64
        %s523 = scalar_lea.vmem [#allocation15], %s522
        %p524 = scmp.lt.s32.totalorder %s32, 1
        %s525 = scalar_select %p524, %s32, 1
        %s526 = smul.addr %s525, 2
        %s527 = smul.addr %s526, 8
        %s528 = scalar_lea.vmem %s1, %s527
        %v530 = vld [vmem:[%s528] sm:$0xff]
        %v531 = vld [vmem:[%s528 + $0x8] sm:$0xff]
        %v532 = vpack.c.bf16 %v530, %v530
        %v533 = vpack.c.bf16 %v531, %v531
        %v534 = vld [vmem:[#allocation11] sm:$0xf]
        %v535 = vld [vmem:[%s4] sm:$0xff]
        %537 = vset.pattern.permute.xlu0 0
        %538 = vperm.xlu0 %537, %v535
        %v539 = vpop.permute.xlu0 %538
        %vm541 = vcmask 64512
        %v543 = vsel %vm541, %v534, 0
        %vm545 = vcmask 1043456
        %v547 = vsel %vm545, %v532, 0
        %v550 = vsel %vm545, %v533, 0
        %552 = vmatprep.subr.bf16.mxu0 0
        %553 = vmatpush1.bf16.msra.mxu0 0
        %554 = vmatprep.subr.bf16.mxu0 0
        %555 = vmatpush1.bf16.msra.mxu0 0
        %556 = vmatprep.subr.bf16.mxu0 0
        %557 = vmatpush1.bf16.msra.mxu0 0
        %558 = vmatprep.subr.bf16.mxu0 0
        %559 = vmatpush1.bf16.msra.mxu0 0
        %560 = vmatprep.subr.bf16.mxu0 0
        %561 = vmatpush1.bf16.msra.mxu0 0
        %562 = vmatprep.subr.bf16.mxu0 0
        %563 = vmatpush1.bf16.msra.mxu0 0
        %564 = vmatprep.subr.bf16.mxu0 0
        %565 = vmatpush1.bf16.msra.mxu0 0
        %566 = vmatprep.subr.bf16.mxu0 %v550
        %567 = vmatpush1.bf16.msra.mxu0 %v547
        %568 = vmatprep.subr.bf16.mxu0 0
        %569 = vmatpush2.bf16.msra.mxu0 0
        %570 = vmatprep.subr.bf16.mxu0 0
        %571 = vmatpush2.bf16.msra.mxu0 0
        %572 = vmatprep.subr.bf16.mxu0 0
        %573 = vmatpush2.bf16.msra.mxu0 0
        %574 = vmatprep.subr.bf16.mxu0 0
        %575 = vmatpush2.bf16.msra.mxu0 0
        %576 = vmatprep.subr.bf16.mxu0 0
        %577 = vmatpush2.bf16.msra.mxu0 0
        %578 = vmatprep.subr.bf16.mxu0 0
        %579 = vmatpush2.bf16.msra.mxu0 0
        %580 = vmatprep.subr.bf16.mxu0 0
        %581 = vmatpush2.bf16.msra.mxu0 0
        %582 = vmatprep.subr.bf16.mxu0 0
        %583 = vmatpush2.bf16.msra.mxu0 0
        %584 = vmatprep.mubr.bf16.mxu0 0
        %585 = vmatmul.mubr.bf16.gmra.mxu0 %v543
        %v586 = vpop.f32.mrf.mxu0
        %v587 = vadd.f32 %v539, %v586
        %v588 = vpop.f32.mrf.mxu0
        %v589 = vadd.f32 %v539, %v588
        %v590 = vpop.f32.mrf.mxu0
        %v591 = vpop.f32.mrf.mxu0
        %592 = vdwg.mxu0
        %v593 = vsub.f32 0.0, %v587
        %v594 = vsub.f32 0.0, %v589
        %v595 = vmul.f32 %v593, 1.442695
        %v596 = vpow.pop %v595
        %v597 = vmul.f32 %v594, 1.442695
        %v598 = vpow.pop %v597
        %v599 = vadd.f32 %v596, 1.0
        %v600 = vadd.f32 %v598, 1.0
        %v601 = vrcp.pop %v599
        %v602 = vrcp.pop %v600
        %v603 = vmul.f32 %v587, %v601
        %v604 = vmul.f32 %v589, %v602
        %v605 = vld [vmem:[#allocation12] sm:$0x3]
        %v606 = vpack.c.bf16 %v603, %v603
        %v607 = vpack.c.bf16 %v604, %v604
        %v608 = vld [vmem:[%s6] sm:$0xf]
        %610 = vset.pattern.permute.xlu0 0
        %611 = vperm.xlu0 %610, %v608
        %v612 = vpop.permute.xlu0 %611
        %vm614 = vcmask 31744
        %v616 = vsel %vm614, %v605, 0
        %vm618 = vcmask 1041408
        %v620 = vsel %vm618, %v606, 0
        %v623 = vsel %vm618, %v607, 0
        %625 = vmatprep.subr.bf16.mxu0 0
        %626 = vmatpush1.bf16.msra.mxu0 0
        %627 = vmatprep.subr.bf16.mxu0 0
        %628 = vmatpush1.bf16.msra.mxu0 0
        %629 = vmatprep.subr.bf16.mxu0 0
        %630 = vmatpush1.bf16.msra.mxu0 0
        %631 = vmatprep.subr.bf16.mxu0 0
        %632 = vmatpush1.bf16.msra.mxu0 0
        %633 = vmatprep.subr.bf16.mxu0 0
        %634 = vmatpush1.bf16.msra.mxu0 0
        %635 = vmatprep.subr.bf16.mxu0 0
        %636 = vmatpush1.bf16.msra.mxu0 0
        %637 = vmatprep.subr.bf16.mxu0 0
        %638 = vmatpush1.bf16.msra.mxu0 0
        %639 = vmatprep.subr.bf16.mxu0 %v623
        %640 = vmatpush1.bf16.msra.mxu0 %v620
        %641 = vmatprep.subr.bf16.mxu0 0
        %642 = vmatpush2.bf16.msra.mxu0 0
        %643 = vmatprep.subr.bf16.mxu0 0
        %644 = vmatpush2.bf16.msra.mxu0 0
        %645 = vmatprep.subr.bf16.mxu0 0
        %646 = vmatpush2.bf16.msra.mxu0 0
        %647 = vmatprep.subr.bf16.mxu0 0
        %648 = vmatpush2.bf16.msra.mxu0 0
        %649 = vmatprep.subr.bf16.mxu0 0
        %650 = vmatpush2.bf16.msra.mxu0 0
        %651 = vmatprep.subr.bf16.mxu0 0
        %652 = vmatpush2.bf16.msra.mxu0 0
        %653 = vmatprep.subr.bf16.mxu0 0
        %654 = vmatpush2.bf16.msra.mxu0 0
        %655 = vmatprep.subr.bf16.mxu0 0
        %656 = vmatpush2.bf16.msra.mxu0 0
        %657 = vmatprep.mubr.bf16.mxu0 0
        %658 = vmatmul.mubr.bf16.gmra.mxu0 %v616
        %v659 = vpop.f32.mrf.mxu0
        %v660 = vadd.f32 %v612, %v659
        %v661 = vpop.f32.mrf.mxu0
        %v662 = vadd.f32 %v612, %v661
        %v663 = vpop.f32.mrf.mxu0
        %v664 = vpop.f32.mrf.mxu0
        %665 = vdwg.mxu0
        %v666 = vsub.f32 0.0, %v660
        %v667 = vsub.f32 0.0, %v662
        %v668 = vmul.f32 %v666, 1.442695
        %v669 = vpow.pop %v668
        %v670 = vmul.f32 %v667, 1.442695
        %v671 = vpow.pop %v670
        %v672 = vadd.f32 %v669, 1.0
        %v673 = vadd.f32 %v671, 1.0
        %v674 = vrcp.pop %v672
        %v675 = vrcp.pop %v673
        %v676 = vmul.f32 %v660, %v674
        %v677 = vmul.f32 %v662, %v675
        %679 = vrot.lane.b32.xlu0 %v677, 17
        %v680 = vpop.permute.xlu0 %679
        %683 = vrot.lane.b32.xlu0 %v676, 17
        %v684 = vpop.permute.xlu0 %683
        %vm685 = vcmask 138240
        %v686 = vsel %vm685, %v684, %v680
        %v689 = vsel %vm685, %v680, %v684
        %v690 = vld [vmem:[#allocation9] sm:$0x3]
        %v692 = vlaneseq
        %v693 = vshrl.u32 %v692, 7
        %v694 = vsub.s32 0, %v693
        %v695 = vrot.slane %v690, %v694
        %v696 = vlaneseq
        %v697 = vshrl.u32 %v696, 7
        %v698 = vsub.s32 1, %v697
        %v699 = vrot.slane %v690, %v698
        %v702 = vmul.f32 %v689, %v695
        %v703 = vmul.f32 %v686, %v699
        %v704 = vpack.c.bf16 %v702, %v702
        %v705 = vpack.c.bf16 %v703, %v703
        %v708 = vunpack.c.l.b16 %v704
        %v709 = vunpack.c.l.b16 %v705
        %v710 = vpack.c.b16 %v709, %v708
        %712 = vst [vmem:[#allocation4] sm:$0x33] %v710
        %713 = vrot.lane.b32.xlu0 %v677, 16
        %v714 = vpop.permute.xlu0 %713
        %716 = vrot.lane.b32.xlu0 %v676, 16
        %v717 = vpop.permute.xlu0 %716
        %vm718 = vcmask 130048
        %v719 = vsel %vm718, %v717, %v714
        %v722 = vsel %vm718, %v714, %v717
        %s723 = scalar_lea.vmem [#allocation9], 2
        %v724 = vld [vmem:[%s723] sm:$0x3]
        %v726 = vlaneseq
        %v727 = vshrl.u32 %v726, 7
        %v728 = vsub.s32 0, %v727
        %v729 = vrot.slane %v724, %v728
        %v730 = vlaneseq
        %v731 = vshrl.u32 %v730, 7
        %v732 = vsub.s32 1, %v731
        %v733 = vrot.slane %v724, %v732
        %v736 = vmul.f32 %v722, %v729
        %v737 = vmul.f32 %v719, %v733
        %v738 = vpack.c.bf16 %v736, %v736
        %v739 = vpack.c.bf16 %v737, %v737
        %v742 = vunpack.c.l.b16 %v738
        %v743 = vunpack.c.l.b16 %v739
        %v744 = vpack.c.b16 %v743, %v742
        %v745 = vrot.slane %v744, 6
        %747 = vst [vmem:[#allocation4] sm:$0xcc] %v745
        %748 = vrot.lane.b32.xlu0 %v677, 15
        %v749 = vpop.permute.xlu0 %748
        %751 = vrot.lane.b32.xlu0 %v676, 15
        %v752 = vpop.permute.xlu0 %751
        %vm753 = vcmask 121856
        %v754 = vsel %vm753, %v752, %v749
        %v757 = vsel %vm753, %v749, %v752
        %s758 = scalar_lea.vmem [#allocation9], 4
        %v759 = vld [vmem:[%s758] sm:$0x3]
        %v761 = vlaneseq
        %v762 = vshrl.u32 %v761, 7
        %v763 = vsub.s32 0, %v762
        %v764 = vrot.slane %v759, %v763
        %v765 = vlaneseq
        %v766 = vshrl.u32 %v765, 7
        %v767 = vsub.s32 1, %v766
        %v768 = vrot.slane %v759, %v767
        %v771 = vmul.f32 %v757, %v764
        %v772 = vmul.f32 %v754, %v768
        %v773 = vpack.c.bf16 %v771, %v771
        %v774 = vpack.c.bf16 %v772, %v772
        %v777 = vunpack.c.l.b16 %v773
        %v778 = vunpack.c.l.b16 %v774
        %v779 = vpack.c.b16 %v778, %v777
        %781 = vst [vmem:[#allocation4 + $0x8] sm:$0x33] %v779
        %782 = vrot.lane.b32.xlu0 %v677, 1
        %v783 = vpop.permute.xlu0 %782
        %785 = vrot.lane.b32.xlu0 %v676, 1
        %v786 = vpop.permute.xlu0 %785
        %vm787 = vcmask 7168
        %v788 = vsel %vm787, %v786, %v783
        %v791 = vsel %vm787, %v783, %v786
        %s792 = scalar_lea.vmem [#allocation9], 6
        %v793 = vld [vmem:[%s792] sm:$0x3]
        %v795 = vlaneseq
        %v796 = vshrl.u32 %v795, 7
        %v797 = vsub.s32 0, %v796
        %v798 = vrot.slane %v793, %v797
        %v799 = vlaneseq
        %v800 = vshrl.u32 %v799, 7
        %v801 = vsub.s32 1, %v800
        %v802 = vrot.slane %v793, %v801
        %v805 = vmul.f32 %v791, %v798
        %v806 = vmul.f32 %v788, %v802
        %v807 = vpack.c.bf16 %v805, %v805
        %v808 = vpack.c.bf16 %v806, %v806
        %v811 = vunpack.c.l.b16 %v807
        %v812 = vunpack.c.l.b16 %v808
        %v813 = vpack.c.b16 %v812, %v811
        %v814 = vrot.slane %v813, 6
        %816 = vst [vmem:[#allocation4 + $0x8] sm:$0xcc] %v814
        %v817 = vpack.c.bf16 %v676, %v676
        %v818 = vpack.c.bf16 %v677, %v677
        %v821 = vunpack.c.l.b16 %v817
        %v822 = vunpack.c.l.b16 %v818
        %v823 = vpack.c.b16 %v822, %v821
        %825 = vst [vmem:[#allocation4 + $0x10] sm:$0x33] %v823
        %826 = vrot.lane.b32.xlu0 %v676, 127
        %v827 = vpop.permute.xlu0 %826
        %828 = vrot.lane.b32.xlu0 %v677, 127
        %v829 = vpop.permute.xlu0 %828
        %vm830 = vcmask 1039360
        %v831 = vsel %vm830, %v827, %v829
        %v835 = vsel %vm830, %v829, %v827
        %s836 = scalar_lea.vmem [#allocation9], 10
        %v837 = vld [vmem:[%s836] sm:$0x3]
        %v839 = vlaneseq
        %v840 = vshrl.u32 %v839, 7
        %v841 = vsub.s32 0, %v840
        %v842 = vrot.slane %v837, %v841
        %v843 = vlaneseq
        %v844 = vshrl.u32 %v843, 7
        %v845 = vsub.s32 1, %v844
        %v846 = vrot.slane %v837, %v845
        %v849 = vmul.f32 %v831, %v842
        %v850 = vmul.f32 %v835, %v846
        %v851 = vpack.c.bf16 %v849, %v849
        %v852 = vpack.c.bf16 %v850, %v850
        %v855 = vunpack.c.l.b16 %v851
        %v856 = vunpack.c.l.b16 %v852
        %v857 = vpack.c.b16 %v856, %v855
        %v858 = vrot.slane %v857, 6
        %860 = vst [vmem:[#allocation4 + $0x10] sm:$0xcc] %v858
        %861 = vrot.lane.b32.xlu0 %v676, 113
        %v862 = vpop.permute.xlu0 %861
        %863 = vrot.lane.b32.xlu0 %v677, 113
        %v864 = vpop.permute.xlu0 %863
        %vm865 = vcmask 924672
        %v866 = vsel %vm865, %v862, %v864
        %v870 = vsel %vm865, %v864, %v862
        %s871 = scalar_lea.vmem [#allocation9], 12
        %v872 = vld [vmem:[%s871] sm:$0x3]
        %v874 = vlaneseq
        %v875 = vshrl.u32 %v874, 7
        %v876 = vsub.s32 0, %v875
        %v877 = vrot.slane %v872, %v876
        %v878 = vlaneseq
        %v879 = vshrl.u32 %v878, 7
        %v880 = vsub.s32 1, %v879
        %v881 = vrot.slane %v872, %v880
        %v884 = vmul.f32 %v866, %v877
        %v885 = vmul.f32 %v870, %v881
        %v886 = vpack.c.bf16 %v884, %v884
        %v887 = vpack.c.bf16 %v885, %v885
        %v890 = vunpack.c.l.b16 %v886
        %v891 = vunpack.c.l.b16 %v887
        %v892 = vpack.c.b16 %v891, %v890
        %894 = vst [vmem:[#allocation4 + $0x18] sm:$0x33] %v892
        %895 = vrot.lane.b32.xlu0 %v676, 112
        %v896 = vpop.permute.xlu0 %895
        %897 = vrot.lane.b32.xlu0 %v677, 112
        %v898 = vpop.permute.xlu0 %897
        %vm899 = vcmask 916480
        %v900 = vsel %vm899, %v896, %v898
        %v904 = vsel %vm899, %v898, %v896
        %s905 = scalar_lea.vmem [#allocation9], 14
        %v906 = vld [vmem:[%s905] sm:$0x3]
        %v908 = vlaneseq
        %v909 = vshrl.u32 %v908, 7
        %v910 = vsub.s32 0, %v909
        %v911 = vrot.slane %v906, %v910
        %v912 = vlaneseq
        %v913 = vshrl.u32 %v912, 7
        %v914 = vsub.s32 1, %v913
        %v915 = vrot.slane %v906, %v914
        %v918 = vmul.f32 %v900, %v911
        %v919 = vmul.f32 %v904, %v915
        %v920 = vpack.c.bf16 %v918, %v918
        %v921 = vpack.c.bf16 %v919, %v919
        %v924 = vunpack.c.l.b16 %v920
        %v925 = vunpack.c.l.b16 %v921
        %v926 = vpack.c.b16 %v925, %v924
        %v927 = vrot.slane %v926, 6
        %929 = vst [vmem:[#allocation4 + $0x18] sm:$0xcc] %v927
        %930 = vrot.lane.b32.xlu0 %v676, 111
        %v931 = vpop.permute.xlu0 %930
        %932 = vrot.lane.b32.xlu0 %v677, 111
        %v933 = vpop.permute.xlu0 %932
        %vm934 = vcmask 908288
        %v935 = vsel %vm934, %v931, %v933
        %v939 = vsel %vm934, %v933, %v931
        %s940 = scalar_lea.vmem [#allocation9], 16
        %v941 = vld [vmem:[%s940] sm:$0x3]
        %v943 = vlaneseq
        %v944 = vshrl.u32 %v943, 7
        %v945 = vsub.s32 0, %v944
        %v946 = vrot.slane %v941, %v945
        %v947 = vlaneseq
        %v948 = vshrl.u32 %v947, 7
        %v949 = vsub.s32 1, %v948
        %v950 = vrot.slane %v941, %v949
        %v953 = vmul.f32 %v935, %v946
        %v954 = vmul.f32 %v939, %v950
        %v955 = vpack.c.bf16 %v953, %v953
        %v956 = vpack.c.bf16 %v954, %v954
        %v959 = vunpack.c.l.b16 %v955
        %v960 = vunpack.c.l.b16 %v956
        %v961 = vpack.c.b16 %v960, %v959
        %963 = vst [vmem:[#allocation4 + $0x20] sm:$0x33] %v961
        %v964 = vld [vmem:[#allocation14] sm:$0x3]
        %v965 = vld [vmem:[#allocation4] sm:$0xff]
        %v966 = vld [vmem:[#allocation4 + $0x8] sm:$0xff]
        %v967 = vld [vmem:[#allocation4 + $0x10] sm:$0xff]
        %v968 = vld [vmem:[#allocation4 + $0x18] sm:$0xff]
        %v969 = vld [vmem:[#allocation4 + $0x20] sm:$0x33]
        %v970 = vld [vmem:[%s8] sm:$0xf]
        %972 = vset.pattern.permute.xlu0 0
        %973 = vperm.xlu0 %972, %v970
        %v974 = vpop.permute.xlu0 %973
        %v981 = vunpack.c.l.b16 %v965
        %v982 = vunpack.c.h.b16 %v965
        %v983 = vunpack.c.l.b16 %v966
        %v984 = vunpack.c.h.b16 %v966
        %v985 = vunpack.c.l.b16 %v967
        %v986 = vunpack.c.h.b16 %v967
        %v987 = vunpack.c.l.b16 %v968
        %v988 = vunpack.c.h.b16 %v968
        %v989 = vunpack.c.l.b16 %v969
        %v990 = vunpack.c.h.b16 %v969
        %v991 = vpack.c.b16 %v983, %v981
        %v992 = vpack.c.b16 %v984, %v982
        %v993 = vpack.c.b16 %v987, %v985
        %v994 = vpack.c.b16 %v988, %v986
        %v995 = vpack.c.b16 %v989, %v989
        %v996 = vpack.c.b16 %v990, %v990
        %vm1001 = vcmask 293888
        %v1003 = vsel %vm1001, %v964, 0
        %v1006 = vsel %vm618, %v995, 0
        %v1009 = vsel %vm618, %v996, 0
        %1011 = vmatprep.subr.bf16.mxu0 0
        %1012 = vmatpush1.bf16.msra.mxu0 0
        %1013 = vmatprep.subr.bf16.mxu0 0
        %1014 = vmatpush1.bf16.msra.mxu0 0
        %1015 = vmatprep.subr.bf16.mxu0 0
        %1016 = vmatpush1.bf16.msra.mxu0 0
        %1017 = vmatprep.subr.bf16.mxu0 0
        %1018 = vmatpush1.bf16.msra.mxu0 0
        %1019 = vmatprep.subr.bf16.mxu0 0
        %1020 = vmatpush1.bf16.msra.mxu0 0
        %1021 = vmatprep.subr.bf16.mxu0 %v1009
        %1022 = vmatpush1.bf16.msra.mxu0 %v1006
        %1023 = vmatprep.subr.bf16.mxu0 %v994
        %1024 = vmatpush1.bf16.msra.mxu0 %v993
        %1025 = vmatprep.subr.bf16.mxu0 %v992
        %1026 = vmatpush1.bf16.msra.mxu0 %v991
        %1027 = vmatprep.subr.bf16.mxu0 0
        %1028 = vmatpush2.bf16.msra.mxu0 0
        %1029 = vmatprep.subr.bf16.mxu0 0
        %1030 = vmatpush2.bf16.msra.mxu0 0
        %1031 = vmatprep.subr.bf16.mxu0 0
        %1032 = vmatpush2.bf16.msra.mxu0 0
        %1033 = vmatprep.subr.bf16.mxu0 0
        %1034 = vmatpush2.bf16.msra.mxu0 0
        %1035 = vmatprep.subr.bf16.mxu0 0
        %1036 = vmatpush2.bf16.msra.mxu0 0
        %1037 = vmatprep.subr.bf16.mxu0 0
        %1038 = vmatpush2.bf16.msra.mxu0 0
        %1039 = vmatprep.subr.bf16.mxu0 0
        %1040 = vmatpush2.bf16.msra.mxu0 0
        %1041 = vmatprep.subr.bf16.mxu0 0
        %1042 = vmatpush2.bf16.msra.mxu0 0
        %1043 = vmatprep.mubr.bf16.mxu0 0
        %1044 = vmatmul.mubr.bf16.gmra.mxu0 %v1003
        %v1045 = vpop.f32.mrf.mxu0
        %v1046 = vadd.f32 %v974, %v1045
        %v1047 = vpop.f32.mrf.mxu0
        %v1048 = vadd.f32 %v974, %v1047
        %v1049 = vpop.f32.mrf.mxu0
        %v1050 = vpop.f32.mrf.mxu0
        %1051 = vdwg.mxu0
        %v1052 = vsub.f32 0.0, %v1046
        %v1053 = vsub.f32 0.0, %v1048
        %v1054 = vmul.f32 %v1052, 1.442695
        %v1055 = vpow.pop %v1054
        %v1056 = vmul.f32 %v1053, 1.442695
        %v1057 = vpow.pop %v1056
        %v1058 = vadd.f32 %v1055, 1.0
        %v1059 = vadd.f32 %v1057, 1.0
        %v1060 = vrcp.pop %v1058
        %v1061 = vrcp.pop %v1059
        %v1062 = vmul.f32 %v1046, %v1060
        %v1063 = vmul.f32 %v1048, %v1061
        %v1064 = vadd.f32 %v603, %v1062
        %v1065 = vadd.f32 %v604, %v1063
        %v1066 = vpack.c.bf16 %v1064, %v1064
        %v1067 = vpack.c.bf16 %v1065, %v1065
        %v1070 = vunpack.c.l.b16 %v1066
        %v1071 = vunpack.c.l.b16 %v1067
        %v1072 = vpack.c.b16 %v1071, %v1070
        %1074 = vst [vmem:[#allocation2] sm:$0x33] %v1072
        %v1077 = vunpack.c.l.b16 %v606
        %v1078 = vunpack.c.l.b16 %v607
        %v1079 = vpack.c.b16 %v1078, %v1077
        %1081 = vst [vmem:[#allocation2] sm:$0xcc] %v1079
        %v1082 = vld [vmem:[%s9] sm:$0xf]
        %v1083 = vld [vmem:[#allocation2] sm:$0xff]
        %v1084 = vld [vmem:[%s10] sm:$0xff]
        %1086 = vset.pattern.permute.xlu0 0
        %1087 = vperm.xlu0 %1086, %v1084
        %v1088 = vpop.permute.xlu0 %1087
        %v1091 = vunpack.c.l.b16 %v1083
        %v1092 = vunpack.c.h.b16 %v1083
        %v1093 = vpack.c.b16 %v1091, %v1091
        %v1094 = vpack.c.b16 %v1092, %v1092
        %v1096 = vsel %vm541, %v1082, 0
        %v1099 = vsel %vm545, %v1093, 0
        %v1102 = vsel %vm545, %v1094, 0
        %1104 = vmatprep.subr.bf16.mxu0 0
        %1105 = vmatpush1.bf16.msra.mxu0 0
        %1106 = vmatprep.subr.bf16.mxu0 0
        %1107 = vmatpush1.bf16.msra.mxu0 0
        %1108 = vmatprep.subr.bf16.mxu0 0
        %1109 = vmatpush1.bf16.msra.mxu0 0
        %1110 = vmatprep.subr.bf16.mxu0 0
        %1111 = vmatpush1.bf16.msra.mxu0 0
        %1112 = vmatprep.subr.bf16.mxu0 0
        %1113 = vmatpush1.bf16.msra.mxu0 0
        %1114 = vmatprep.subr.bf16.mxu0 0
        %1115 = vmatpush1.bf16.msra.mxu0 0
        %1116 = vmatprep.subr.bf16.mxu0 0
        %1117 = vmatpush1.bf16.msra.mxu0 0
        %1118 = vmatprep.subr.bf16.mxu0 %v1102
        %1119 = vmatpush1.bf16.msra.mxu0 %v1099
        %1120 = vmatprep.subr.bf16.mxu0 0
        %1121 = vmatpush2.bf16.msra.mxu0 0
        %1122 = vmatprep.subr.bf16.mxu0 0
        %1123 = vmatpush2.bf16.msra.mxu0 0
        %1124 = vmatprep.subr.bf16.mxu0 0
        %1125 = vmatpush2.bf16.msra.mxu0 0
        %1126 = vmatprep.subr.bf16.mxu0 0
        %1127 = vmatpush2.bf16.msra.mxu0 0
        %1128 = vmatprep.subr.bf16.mxu0 0
        %1129 = vmatpush2.bf16.msra.mxu0 0
        %1130 = vmatprep.subr.bf16.mxu0 0
        %1131 = vmatpush2.bf16.msra.mxu0 0
        %1132 = vmatprep.subr.bf16.mxu0 0
        %1133 = vmatpush2.bf16.msra.mxu0 0
        %1134 = vmatprep.subr.bf16.mxu0 0
        %1135 = vmatpush2.bf16.msra.mxu0 0
        %1136 = vmatprep.mubr.bf16.mxu0 0
        %1137 = vmatmul.mubr.bf16.gmra.mxu0 %v1096
        %v1138 = vpop.f32.mrf.mxu0
        %v1139 = vadd.f32 %v1088, %v1138
        %v1140 = vpop.f32.mrf.mxu0
        %v1141 = vadd.f32 %v1088, %v1140
        %v1142 = vpop.f32.mrf.mxu0
        %v1143 = vpop.f32.mrf.mxu0
        %1144 = vdwg.mxu0
        %v1145 = vsub.f32 0.0, %v1139
        %v1146 = vsub.f32 0.0, %v1141
        %v1147 = vmul.f32 %v1145, 1.442695
        %v1148 = vpow.pop %v1147
        %v1149 = vmul.f32 %v1146, 1.442695
        %v1150 = vpow.pop %v1149
        %v1151 = vadd.f32 %v1148, 1.0
        %v1152 = vadd.f32 %v1150, 1.0
        %v1153 = vrcp.pop %v1151
        %v1154 = vrcp.pop %v1152
        %v1155 = vmul.f32 %v1139, %v1153
        %v1156 = vmul.f32 %v1141, %v1154
        %v1157 = vld [vmem:[%s460] sm:$0xff]
        %v1159 = vcombine.high %v1157, %v1157
        %1161 = vst [vmem:[#allocation3] sm:$0xf] %v1157
        %1162 = vst [vmem:[#allocation3 + $0x8] sm:$0xf] %v1159
        %v1165 = vrot.slane %v1155, 4
        %v1166 = vrot.slane %v1156, 4
        %1169 = vst [vmem:[#allocation3] sm:$0xf0] %v1165
        %1170 = vst [vmem:[#allocation3 + $0x8] sm:$0xf0] %v1166
        %1171 = vst [vmem:[#allocation3 + $0x10] sm:$0xf] %v1165
        %1172 = vst [vmem:[#allocation3 + $0x18] sm:$0xf] %v1166
        %v1173 = vld [vmem:[#allocation3] sm:$0xff]
        %v1174 = vld [vmem:[#allocation3 + $0x8] sm:$0xff]
        %v1175 = vld [vmem:[#allocation3 + $0x10] sm:$0xf]
        %v1176 = vld [vmem:[#allocation3 + $0x18] sm:$0xf]
        %v1177 = vld [vmem:[%s12] sm:$0xff]
        %v1178 = vpack.c.bf16 %v1175, %v1173
        %v1179 = vpack.c.bf16 %v1176, %v1174
        %v1182 = vunpack.c.l.b16 %v1178
        %v1183 = vunpack.c.l.b16 %v1179
        %v1184 = vunpack.c.h.b16 %v1178
        %v1185 = vunpack.c.h.b16 %v1179
        %v1186 = vpack.c.b16 %v1183, %v1182
        %v1187 = vpack.c.b16 %v1185, %v1184
        %1190 = vst [vmem:[#allocation5] sm:$0xff] %v1186
        %1191 = vst [vmem:[#allocation5 + $0x8] sm:$0x33] %v1187
        %1194 = vrot.lane.b32.xlu0 %v1174, 1
        %v1195 = vpop.permute.xlu0 %1194
        %1196 = vrot.lane.b32.xlu0 %v1176, 1
        %v1197 = vpop.permute.xlu0 %1196
        %1202 = vrot.lane.b32.xlu0 %v1173, 1
        %v1203 = vpop.permute.xlu0 %1202
        %1204 = vrot.lane.b32.xlu0 %v1175, 1
        %v1205 = vpop.permute.xlu0 %1204
        %v1206 = vsel %vm787, %v1203, %v1195
        %v1207 = vsel %vm787, %v1205, %v1197
        %v1212 = vsel %vm787, %v1195, %v1203
        %v1213 = vsel %vm787, %v1197, %v1205
        %v1214 = vld [vmem:[%s792] sm:$0x3]
        %v1216 = vlaneseq
        %v1217 = vshrl.u32 %v1216, 7
        %v1218 = vsub.s32 0, %v1217
        %v1219 = vrot.slane %v1214, %v1218
        %v1220 = vlaneseq
        %v1221 = vshrl.u32 %v1220, 7
        %v1222 = vsub.s32 1, %v1221
        %v1223 = vrot.slane %v1214, %v1222
        %v1226 = vmul.f32 %v1212, %v1219
        %v1227 = vmul.f32 %v1206, %v1223
        %v1228 = vmul.f32 %v1213, %v1219
        %v1229 = vmul.f32 %v1207, %v1223
        %v1230 = vpack.c.bf16 %v1228, %v1226
        %v1231 = vpack.c.bf16 %v1229, %v1227
        %v1234 = vunpack.c.l.b16 %v1230
        %v1235 = vunpack.c.l.b16 %v1231
        %v1236 = vunpack.c.h.b16 %v1230
        %v1237 = vunpack.c.h.b16 %v1231
        %v1238 = vpack.c.b16 %v1235, %v1234
        %v1239 = vpack.c.b16 %v1237, %v1236
        %vm1240 = vcmask 1041408
        %vm1241 = vcmask 1045508
        %vm1242 = vmor %vm1240, %vm1241
        %v1243 = vrot.slane %v1238, 6
        %v1244 = vrot.slane %v1243, 4
        %v1245 = vrot.slane %v1239, 6
        %v1246 = vsel %vm1242, %v1244, %v1245
        %1249 = vst [vmem:[#allocation5 + $0x8] sm:$0xcc] %v1243
        %1250 = vst [vmem:[#allocation5 + $0x10] sm:$0xff] %v1246
        %1251 = vrot.lane.b32.xlu0 %v1174, 16
        %v1252 = vpop.permute.xlu0 %1251
        %1253 = vrot.lane.b32.xlu0 %v1176, 16
        %v1254 = vpop.permute.xlu0 %1253
        %1257 = vrot.lane.b32.xlu0 %v1173, 16
        %v1258 = vpop.permute.xlu0 %1257
        %1259 = vrot.lane.b32.xlu0 %v1175, 16
        %v1260 = vpop.permute.xlu0 %1259
        %v1261 = vsel %vm718, %v1258, %v1252
        %v1262 = vsel %vm718, %v1260, %v1254
        %v1267 = vsel %vm718, %v1252, %v1258
        %v1268 = vsel %vm718, %v1254, %v1260
        %v1269 = vld [vmem:[%s723] sm:$0x3]
        %v1271 = vlaneseq
        %v1272 = vshrl.u32 %v1271, 7
        %v1273 = vsub.s32 0, %v1272
        %v1274 = vrot.slane %v1269, %v1273
        %v1275 = vlaneseq
        %v1276 = vshrl.u32 %v1275, 7
        %v1277 = vsub.s32 1, %v1276
        %v1278 = vrot.slane %v1269, %v1277
        %v1281 = vmul.f32 %v1267, %v1274
        %v1282 = vmul.f32 %v1261, %v1278
        %v1283 = vmul.f32 %v1268, %v1274
        %v1284 = vmul.f32 %v1262, %v1278
        %v1285 = vpack.c.bf16 %v1283, %v1281
        %v1286 = vpack.c.bf16 %v1284, %v1282
        %v1289 = vunpack.c.l.b16 %v1285
        %v1290 = vunpack.c.l.b16 %v1286
        %v1291 = vunpack.c.h.b16 %v1285
        %v1292 = vunpack.c.h.b16 %v1286
        %v1293 = vpack.c.b16 %v1290, %v1289
        %v1294 = vpack.c.b16 %v1292, %v1291
        %1297 = vst [vmem:[#allocation5 + $0x18] sm:$0xff] %v1293
        %1298 = vst [vmem:[#allocation5 + $0x20] sm:$0x33] %v1294
        %1299 = vrot.lane.b32.xlu0 %v1174, 17
        %v1300 = vpop.permute.xlu0 %1299
        %1301 = vrot.lane.b32.xlu0 %v1176, 17
        %v1302 = vpop.permute.xlu0 %1301
        %1305 = vrot.lane.b32.xlu0 %v1173, 17
        %v1306 = vpop.permute.xlu0 %1305
        %1307 = vrot.lane.b32.xlu0 %v1175, 17
        %v1308 = vpop.permute.xlu0 %1307
        %v1309 = vsel %vm685, %v1306, %v1300
        %v1310 = vsel %vm685, %v1308, %v1302
        %v1315 = vsel %vm685, %v1300, %v1306
        %v1316 = vsel %vm685, %v1302, %v1308
        %v1317 = vld [vmem:[#allocation9] sm:$0x3]
        %v1319 = vlaneseq
        %v1320 = vshrl.u32 %v1319, 7
        %v1321 = vsub.s32 0, %v1320
        %v1322 = vrot.slane %v1317, %v1321
        %v1323 = vlaneseq
        %v1324 = vshrl.u32 %v1323, 7
        %v1325 = vsub.s32 1, %v1324
        %v1326 = vrot.slane %v1317, %v1325
        %v1329 = vmul.f32 %v1315, %v1322
        %v1330 = vmul.f32 %v1309, %v1326
        %v1331 = vmul.f32 %v1316, %v1322
        %v1332 = vmul.f32 %v1310, %v1326
        %v1333 = vpack.c.bf16 %v1331, %v1329
        %v1334 = vpack.c.bf16 %v1332, %v1330
        %v1337 = vunpack.c.l.b16 %v1333
        %v1338 = vunpack.c.l.b16 %v1334
        %v1339 = vunpack.c.h.b16 %v1333
        %v1340 = vunpack.c.h.b16 %v1334
        %v1341 = vpack.c.b16 %v1338, %v1337
        %v1342 = vpack.c.b16 %v1340, %v1339
        %v1343 = vrot.slane %v1341, 6
        %v1344 = vrot.slane %v1343, 4
        %v1345 = vrot.slane %v1342, 6
        %v1346 = vsel %vm1242, %v1344, %v1345
        %1349 = vst [vmem:[#allocation5 + $0x20] sm:$0xcc] %v1343
        %1350 = vst [vmem:[#allocation5 + $0x28] sm:$0xff] %v1346
        %v1351 = vld [vmem:[%s11] sm:$0xf]
        %v1352 = vld [vmem:[#allocation5] sm:$0xff]
        %v1353 = vld [vmem:[#allocation5 + $0x8] sm:$0xff]
        %v1354 = vld [vmem:[#allocation5 + $0x10] sm:$0xff]
        %v1355 = vld [vmem:[#allocation5 + $0x18] sm:$0xff]
        %v1356 = vld [vmem:[#allocation5 + $0x20] sm:$0xff]
        %v1357 = vld [vmem:[#allocation5 + $0x28] sm:$0xff]
        %1359 = vset.pattern.permute.xlu0 0
        %1360 = vperm.xlu0 %1359, %v1177
        %v1361 = vpop.permute.xlu0 %1360
        %v1369 = vunpack.c.l.b16 %v1352
        %v1370 = vunpack.c.h.b16 %v1352
        %v1371 = vunpack.c.l.b16 %v1353
        %v1372 = vunpack.c.h.b16 %v1353
        %v1373 = vunpack.c.l.b16 %v1354
        %v1374 = vunpack.c.h.b16 %v1354
        %v1375 = vunpack.c.l.b16 %v1355
        %v1376 = vunpack.c.h.b16 %v1355
        %v1377 = vunpack.c.l.b16 %v1356
        %v1378 = vunpack.c.h.b16 %v1356
        %v1379 = vunpack.c.l.b16 %v1357
        %v1380 = vunpack.c.h.b16 %v1357
        %v1381 = vpack.c.b16 %v1371, %v1369
        %v1382 = vpack.c.b16 %v1372, %v1370
        %v1383 = vpack.c.b16 %v1375, %v1373
        %v1384 = vpack.c.b16 %v1376, %v1374
        %v1385 = vpack.c.b16 %v1379, %v1377
        %v1386 = vpack.c.b16 %v1380, %v1378
        %vm1393 = vcmask 392192
        %v1395 = vsel %vm1393, %v1351, 0
        %1397 = vmatprep.subr.bf16.mxu0 0
        %1398 = vmatpush1.bf16.msra.mxu0 0
        %1399 = vmatprep.subr.bf16.mxu0 0
        %1400 = vmatpush1.bf16.msra.mxu0 0
        %1401 = vmatprep.subr.bf16.mxu0 0
        %1402 = vmatpush1.bf16.msra.mxu0 0
        %1403 = vmatprep.subr.bf16.mxu0 0
        %1404 = vmatpush1.bf16.msra.mxu0 0
        %1405 = vmatprep.subr.bf16.mxu0 0
        %1406 = vmatpush1.bf16.msra.mxu0 0
        %1407 = vmatprep.subr.bf16.mxu0 %v1386
        %1408 = vmatpush1.bf16.msra.mxu0 %v1385
        %1409 = vmatprep.subr.bf16.mxu0 %v1384
        %1410 = vmatpush1.bf16.msra.mxu0 %v1383
        %1411 = vmatprep.subr.bf16.mxu0 %v1382
        %1412 = vmatpush1.bf16.msra.mxu0 %v1381
        %1413 = vmatprep.subr.bf16.mxu0 0
        %1414 = vmatpush2.bf16.msra.mxu0 0
        %1415 = vmatprep.subr.bf16.mxu0 0
        %1416 = vmatpush2.bf16.msra.mxu0 0
        %1417 = vmatprep.subr.bf16.mxu0 0
        %1418 = vmatpush2.bf16.msra.mxu0 0
        %1419 = vmatprep.subr.bf16.mxu0 0
        %1420 = vmatpush2.bf16.msra.mxu0 0
        %1421 = vmatprep.subr.bf16.mxu0 0
        %1422 = vmatpush2.bf16.msra.mxu0 0
        %1423 = vmatprep.subr.bf16.mxu0 0
        %1424 = vmatpush2.bf16.msra.mxu0 0
        %1425 = vmatprep.subr.bf16.mxu0 0
        %1426 = vmatpush2.bf16.msra.mxu0 0
        %1427 = vmatprep.subr.bf16.mxu0 0
        %1428 = vmatpush2.bf16.msra.mxu0 0
        %1429 = vmatprep.mubr.bf16.mxu0 0
        %1430 = vmatmul.mubr.bf16.gmra.mxu0 %v1395
        %v1431 = vpop.f32.mrf.mxu0
        %v1432 = vadd.f32 %v1361, %v1431
        %v1433 = vpop.f32.mrf.mxu0
        %v1434 = vadd.f32 %v1361, %v1433
        %v1435 = vpop.f32.mrf.mxu0
        %v1436 = vpop.f32.mrf.mxu0
        %1437 = vdwg.mxu0
        %v1438 = vsub.f32 0.0, %v1432
        %v1439 = vsub.f32 0.0, %v1434
        %v1440 = vmul.f32 %v1438, 1.442695
        %v1441 = vpow.pop %v1440
        %v1442 = vmul.f32 %v1439, 1.442695
        %v1443 = vpow.pop %v1442
        %v1444 = vadd.f32 %v1441, 1.0
        %v1445 = vadd.f32 %v1443, 1.0
        %v1446 = vrcp.pop %v1444
        %v1447 = vrcp.pop %v1445
        %v1448 = vmul.f32 %v1432, %v1446
        %v1449 = vmul.f32 %v1434, %v1447
        %1450 = vst [vmem:[%s523] sm:$0xff] %v1448
        %1451 = vst [vmem:[%s523 + $0x8] sm:$0xff] %v1449
        %1452 = vrot.lane.b32.xlu0 %v1173, 127
        %v1453 = vpop.permute.xlu0 %1452
        %1454 = vrot.lane.b32.xlu0 %v1174, 127
        %v1455 = vpop.permute.xlu0 %1454
        %1456 = vrot.lane.b32.xlu0 %v1175, 127
        %v1457 = vpop.permute.xlu0 %1456
        %1458 = vrot.lane.b32.xlu0 %v1176, 127
        %v1459 = vpop.permute.xlu0 %1458
        %v1460 = vsel %vm830, %v1453, %v1455
        %v1461 = vsel %vm830, %v1457, %v1459
        %v1468 = vsel %vm830, %v1455, %v1453
        %v1469 = vsel %vm830, %v1459, %v1457
        %v1470 = vld [vmem:[%s836] sm:$0x3]
        %v1472 = vlaneseq
        %v1473 = vshrl.u32 %v1472, 7
        %v1474 = vsub.s32 0, %v1473
        %v1475 = vrot.slane %v1470, %v1474
        %v1476 = vlaneseq
        %v1477 = vshrl.u32 %v1476, 7
        %v1478 = vsub.s32 1, %v1477
        %v1479 = vrot.slane %v1470, %v1478
        %v1482 = vmul.f32 %v1460, %v1475
        %v1483 = vmul.f32 %v1468, %v1479
        %v1484 = vmul.f32 %v1461, %v1475
        %v1485 = vmul.f32 %v1469, %v1479
        %v1486 = vpack.c.bf16 %v1484, %v1482
        %v1487 = vpack.c.bf16 %v1485, %v1483
        %v1490 = vunpack.c.l.b16 %v1486
        %v1491 = vunpack.c.l.b16 %v1487
        %v1492 = vunpack.c.h.b16 %v1486
        %v1493 = vunpack.c.h.b16 %v1487
        %v1494 = vpack.c.b16 %v1491, %v1490
        %v1495 = vpack.c.b16 %v1493, %v1492
        %1498 = vst [vmem:[#allocation5] sm:$0xff] %v1494
        %1499 = vst [vmem:[#allocation5 + $0x8] sm:$0x33] %v1495
        %v1500 = vrot.slane %v1186, 6
        %v1501 = vrot.slane %v1500, 4
        %v1502 = vrot.slane %v1187, 6
        %v1503 = vsel %vm1242, %v1501, %v1502
        %1506 = vst [vmem:[#allocation5 + $0x8] sm:$0xcc] %v1500
        %1507 = vst [vmem:[#allocation5 + $0x10] sm:$0xff] %v1503
        %1508 = vrot.lane.b32.xlu0 %v1174, 15
        %v1509 = vpop.permute.xlu0 %1508
        %1510 = vrot.lane.b32.xlu0 %v1176, 15
        %v1511 = vpop.permute.xlu0 %1510
        %1514 = vrot.lane.b32.xlu0 %v1173, 15
        %v1515 = vpop.permute.xlu0 %1514
        %1516 = vrot.lane.b32.xlu0 %v1175, 15
        %v1517 = vpop.permute.xlu0 %1516
        %v1518 = vsel %vm753, %v1515, %v1509
        %v1519 = vsel %vm753, %v1517, %v1511
        %v1524 = vsel %vm753, %v1509, %v1515
        %v1525 = vsel %vm753, %v1511, %v1517
        %v1526 = vld [vmem:[%s758] sm:$0x3]
        %v1528 = vlaneseq
        %v1529 = vshrl.u32 %v1528, 7
        %v1530 = vsub.s32 0, %v1529
        %v1531 = vrot.slane %v1526, %v1530
        %v1532 = vlaneseq
        %v1533 = vshrl.u32 %v1532, 7
        %v1534 = vsub.s32 1, %v1533
        %v1535 = vrot.slane %v1526, %v1534
        %v1538 = vmul.f32 %v1524, %v1531
        %v1539 = vmul.f32 %v1518, %v1535
        %v1540 = vmul.f32 %v1525, %v1531
        %v1541 = vmul.f32 %v1519, %v1535
        %v1542 = vpack.c.bf16 %v1540, %v1538
        %v1543 = vpack.c.bf16 %v1541, %v1539
        %v1546 = vunpack.c.l.b16 %v1542
        %v1547 = vunpack.c.l.b16 %v1543
        %v1548 = vunpack.c.h.b16 %v1542
        %v1549 = vunpack.c.h.b16 %v1543
        %v1550 = vpack.c.b16 %v1547, %v1546
        %v1551 = vpack.c.b16 %v1549, %v1548
        %1554 = vst [vmem:[#allocation5 + $0x18] sm:$0xff] %v1550
        %1555 = vst [vmem:[#allocation5 + $0x20] sm:$0x33] %v1551
        %v1556 = vrot.slane %v1293, 6
        %v1557 = vrot.slane %v1556, 4
        %v1558 = vrot.slane %v1294, 6
        %v1559 = vsel %vm1242, %v1557, %v1558
        %1562 = vst [vmem:[#allocation5 + $0x20] sm:$0xcc] %v1556
        %1563 = vst [vmem:[#allocation5 + $0x28] sm:$0xff] %v1559
        %s1564 = scalar_lea.vmem %s11, 4
        %v1565 = vld [vmem:[%s1564] sm:$0xf]
        %v1566 = vld [vmem:[#allocation5] sm:$0xff]
        %v1567 = vld [vmem:[#allocation5 + $0x8] sm:$0xff]
        %v1568 = vld [vmem:[#allocation5 + $0x10] sm:$0xff]
        %v1569 = vld [vmem:[#allocation5 + $0x18] sm:$0xff]
        %v1570 = vld [vmem:[#allocation5 + $0x20] sm:$0xff]
        %v1571 = vld [vmem:[#allocation5 + $0x28] sm:$0xff]
        %v1578 = vunpack.c.l.b16 %v1566
        %v1579 = vunpack.c.h.b16 %v1566
        %v1580 = vunpack.c.l.b16 %v1567
        %v1581 = vunpack.c.h.b16 %v1567
        %v1582 = vunpack.c.l.b16 %v1568
        %v1583 = vunpack.c.h.b16 %v1568
        %v1584 = vunpack.c.l.b16 %v1569
        %v1585 = vunpack.c.h.b16 %v1569
        %v1586 = vunpack.c.l.b16 %v1570
        %v1587 = vunpack.c.h.b16 %v1570
        %v1588 = vunpack.c.l.b16 %v1571
        %v1589 = vunpack.c.h.b16 %v1571
        %v1590 = vpack.c.b16 %v1580, %v1578
        %v1591 = vpack.c.b16 %v1581, %v1579
        %v1592 = vpack.c.b16 %v1584, %v1582
        %v1593 = vpack.c.b16 %v1585, %v1583
        %v1594 = vpack.c.b16 %v1588, %v1586
        %v1595 = vpack.c.b16 %v1589, %v1587
        %v1603 = vsel %vm1393, %v1565, 0
        %1605 = vmatprep.subr.bf16.mxu0 0
        %1606 = vmatpush1.bf16.msra.mxu0 0
        %1607 = vmatprep.subr.bf16.mxu0 0
        %1608 = vmatpush1.bf16.msra.mxu0 0
        %1609 = vmatprep.subr.bf16.mxu0 0
        %1610 = vmatpush1.bf16.msra.mxu0 0
        %1611 = vmatprep.subr.bf16.mxu0 0
        %1612 = vmatpush1.bf16.msra.mxu0 0
        %1613 = vmatprep.subr.bf16.mxu0 0
        %1614 = vmatpush1.bf16.msra.mxu0 0
        %1615 = vmatprep.subr.bf16.mxu0 %v1595
        %1616 = vmatpush1.bf16.msra.mxu0 %v1594
        %1617 = vmatprep.subr.bf16.mxu0 %v1593
        %1618 = vmatpush1.bf16.msra.mxu0 %v1592
        %1619 = vmatprep.subr.bf16.mxu0 %v1591
        %1620 = vmatpush1.bf16.msra.mxu0 %v1590
        %1621 = vmatprep.subr.bf16.mxu0 0
        %1622 = vmatpush2.bf16.msra.mxu0 0
        %1623 = vmatprep.subr.bf16.mxu0 0
        %1624 = vmatpush2.bf16.msra.mxu0 0
        %1625 = vmatprep.subr.bf16.mxu0 0
        %1626 = vmatpush2.bf16.msra.mxu0 0
        %1627 = vmatprep.subr.bf16.mxu0 0
        %1628 = vmatpush2.bf16.msra.mxu0 0
        %1629 = vmatprep.subr.bf16.mxu0 0
        %1630 = vmatpush2.bf16.msra.mxu0 0
        %1631 = vmatprep.subr.bf16.mxu0 0
        %1632 = vmatpush2.bf16.msra.mxu0 0
        %1633 = vmatprep.subr.bf16.mxu0 0
        %1634 = vmatpush2.bf16.msra.mxu0 0
        %1635 = vmatprep.subr.bf16.mxu0 0
        %1636 = vmatpush2.bf16.msra.mxu0 0
        %1637 = vmatprep.mubr.bf16.mxu0 0
        %1638 = vmatmul.mubr.bf16.gmra.mxu0 %v1603
        %v1639 = vpop.f32.mrf.mxu0
        %v1640 = vadd.f32 %v1361, %v1639
        %v1641 = vpop.f32.mrf.mxu0
        %v1642 = vadd.f32 %v1361, %v1641
        %v1643 = vpop.f32.mrf.mxu0
        %v1644 = vpop.f32.mrf.mxu0
        %1645 = vdwg.mxu0
        %v1646 = vsub.f32 0.0, %v1640
        %v1647 = vsub.f32 0.0, %v1642
        %v1648 = vmul.f32 %v1646, 1.442695
        %v1649 = vpow.pop %v1648
        %v1650 = vmul.f32 %v1647, 1.442695
        %v1651 = vpow.pop %v1650
        %v1652 = vadd.f32 %v1649, 1.0
        %v1653 = vadd.f32 %v1651, 1.0
        %v1654 = vrcp.pop %v1652
        %v1655 = vrcp.pop %v1653
        %v1656 = vmul.f32 %v1640, %v1654
        %v1657 = vmul.f32 %v1642, %v1655
        %s1658 = scalar_lea.vmem %s523, 16 [#allocation15]
        %1659 = vst [vmem:[%s1658] sm:$0xff] %v1656
        %1660 = vst [vmem:[%s1658 + $0x8] sm:$0xff] %v1657
        %1661 = vrot.lane.b32.xlu0 %v1173, 112
        %v1662 = vpop.permute.xlu0 %1661
        %1663 = vrot.lane.b32.xlu0 %v1174, 112
        %v1664 = vpop.permute.xlu0 %1663
        %1665 = vrot.lane.b32.xlu0 %v1175, 112
        %v1666 = vpop.permute.xlu0 %1665
        %1667 = vrot.lane.b32.xlu0 %v1176, 112
        %v1668 = vpop.permute.xlu0 %1667
        %v1669 = vsel %vm899, %v1662, %v1664
        %v1670 = vsel %vm899, %v1666, %v1668
        %v1677 = vsel %vm899, %v1664, %v1662
        %v1678 = vsel %vm899, %v1668, %v1666
        %v1679 = vld [vmem:[%s905] sm:$0x3]
        %v1681 = vlaneseq
        %v1682 = vshrl.u32 %v1681, 7
        %v1683 = vsub.s32 0, %v1682
        %v1684 = vrot.slane %v1679, %v1683
        %v1685 = vlaneseq
        %v1686 = vshrl.u32 %v1685, 7
        %v1687 = vsub.s32 1, %v1686
        %v1688 = vrot.slane %v1679, %v1687
        %v1691 = vmul.f32 %v1669, %v1684
        %v1692 = vmul.f32 %v1677, %v1688
        %v1693 = vmul.f32 %v1670, %v1684
        %v1694 = vmul.f32 %v1678, %v1688
        %v1695 = vpack.c.bf16 %v1693, %v1691
        %v1696 = vpack.c.bf16 %v1694, %v1692
        %v1699 = vunpack.c.l.b16 %v1695
        %v1700 = vunpack.c.l.b16 %v1696
        %v1701 = vunpack.c.h.b16 %v1695
        %v1702 = vunpack.c.h.b16 %v1696
        %v1703 = vpack.c.b16 %v1700, %v1699
        %v1704 = vpack.c.b16 %v1702, %v1701
        %1707 = vst [vmem:[#allocation5] sm:$0xff] %v1703
        %1708 = vst [vmem:[#allocation5 + $0x8] sm:$0x33] %v1704
        %1709 = vrot.lane.b32.xlu0 %v1173, 113
        %v1710 = vpop.permute.xlu0 %1709
        %1711 = vrot.lane.b32.xlu0 %v1174, 113
        %v1712 = vpop.permute.xlu0 %1711
        %1713 = vrot.lane.b32.xlu0 %v1175, 113
        %v1714 = vpop.permute.xlu0 %1713
        %1715 = vrot.lane.b32.xlu0 %v1176, 113
        %v1716 = vpop.permute.xlu0 %1715
        %v1717 = vsel %vm865, %v1710, %v1712
        %v1718 = vsel %vm865, %v1714, %v1716
        %v1725 = vsel %vm865, %v1712, %v1710
        %v1726 = vsel %vm865, %v1716, %v1714
        %v1727 = vld [vmem:[%s871] sm:$0x3]
        %v1729 = vlaneseq
        %v1730 = vshrl.u32 %v1729, 7
        %v1731 = vsub.s32 0, %v1730
        %v1732 = vrot.slane %v1727, %v1731
        %v1733 = vlaneseq
        %v1734 = vshrl.u32 %v1733, 7
        %v1735 = vsub.s32 1, %v1734
        %v1736 = vrot.slane %v1727, %v1735
        %v1739 = vmul.f32 %v1717, %v1732
        %v1740 = vmul.f32 %v1725, %v1736
        %v1741 = vmul.f32 %v1718, %v1732
        %v1742 = vmul.f32 %v1726, %v1736
        %v1743 = vpack.c.bf16 %v1741, %v1739
        %v1744 = vpack.c.bf16 %v1742, %v1740
        %v1747 = vunpack.c.l.b16 %v1743
        %v1748 = vunpack.c.l.b16 %v1744
        %v1749 = vunpack.c.h.b16 %v1743
        %v1750 = vunpack.c.h.b16 %v1744
        %v1751 = vpack.c.b16 %v1748, %v1747
        %v1752 = vpack.c.b16 %v1750, %v1749
        %v1753 = vrot.slane %v1751, 6
        %v1754 = vrot.slane %v1753, 4
        %v1755 = vrot.slane %v1752, 6
        %v1756 = vsel %vm1242, %v1754, %v1755
        %1759 = vst [vmem:[#allocation5 + $0x8] sm:$0xcc] %v1753
        %1760 = vst [vmem:[#allocation5 + $0x10] sm:$0xff] %v1756
        %1761 = vst [vmem:[#allocation5 + $0x18] sm:$0xff] %v1186
        %1762 = vst [vmem:[#allocation5 + $0x20] sm:$0x33] %v1187
        %1763 = vst [vmem:[#allocation5 + $0x20] sm:$0xcc] %v1243
        %1764 = vst [vmem:[#allocation5 + $0x28] sm:$0xff] %v1246
        %s1765 = scalar_lea.vmem %s11, 8
        %v1766 = vld [vmem:[%s1765] sm:$0xf]
        %v1767 = vld [vmem:[#allocation5] sm:$0xff]
        %v1768 = vld [vmem:[#allocation5 + $0x8] sm:$0xff]
        %v1769 = vld [vmem:[#allocation5 + $0x10] sm:$0xff]
        %v1770 = vld [vmem:[#allocation5 + $0x18] sm:$0xff]
        %v1771 = vld [vmem:[#allocation5 + $0x20] sm:$0xff]
        %v1772 = vld [vmem:[#allocation5 + $0x28] sm:$0xff]
        %v1779 = vunpack.c.l.b16 %v1767
        %v1780 = vunpack.c.h.b16 %v1767
        %v1781 = vunpack.c.l.b16 %v1768
        %v1782 = vunpack.c.h.b16 %v1768
        %v1783 = vunpack.c.l.b16 %v1769
        %v1784 = vunpack.c.h.b16 %v1769
        %v1785 = vunpack.c.l.b16 %v1770
        %v1786 = vunpack.c.h.b16 %v1770
        %v1787 = vunpack.c.l.b16 %v1771
        %v1788 = vunpack.c.h.b16 %v1771
        %v1789 = vunpack.c.l.b16 %v1772
        %v1790 = vunpack.c.h.b16 %v1772
        %v1791 = vpack.c.b16 %v1781, %v1779
        %v1792 = vpack.c.b16 %v1782, %v1780
        %v1793 = vpack.c.b16 %v1785, %v1783
        %v1794 = vpack.c.b16 %v1786, %v1784
        %v1795 = vpack.c.b16 %v1789, %v1787
        %v1796 = vpack.c.b16 %v1790, %v1788
        %v1804 = vsel %vm1393, %v1766, 0
        %1806 = vmatprep.subr.bf16.mxu0 0
        %1807 = vmatpush1.bf16.msra.mxu0 0
        %1808 = vmatprep.subr.bf16.mxu0 0
        %1809 = vmatpush1.bf16.msra.mxu0 0
        %1810 = vmatprep.subr.bf16.mxu0 0
        %1811 = vmatpush1.bf16.msra.mxu0 0
        %1812 = vmatprep.subr.bf16.mxu0 0
        %1813 = vmatpush1.bf16.msra.mxu0 0
        %1814 = vmatprep.subr.bf16.mxu0 0
        %1815 = vmatpush1.bf16.msra.mxu0 0
        %1816 = vmatprep.subr.bf16.mxu0 %v1796
        %1817 = vmatpush1.bf16.msra.mxu0 %v1795
        %1818 = vmatprep.subr.bf16.mxu0 %v1794
        %1819 = vmatpush1.bf16.msra.mxu0 %v1793
        %1820 = vmatprep.subr.bf16.mxu0 %v1792
        %1821 = vmatpush1.bf16.msra.mxu0 %v1791
        %1822 = vmatprep.subr.bf16.mxu0 0
        %1823 = vmatpush2.bf16.msra.mxu0 0
        %1824 = vmatprep.subr.bf16.mxu0 0
        %1825 = vmatpush2.bf16.msra.mxu0 0
        %1826 = vmatprep.subr.bf16.mxu0 0
        %1827 = vmatpush2.bf16.msra.mxu0 0
        %1828 = vmatprep.subr.bf16.mxu0 0
        %1829 = vmatpush2.bf16.msra.mxu0 0
        %1830 = vmatprep.subr.bf16.mxu0 0
        %1831 = vmatpush2.bf16.msra.mxu0 0
        %1832 = vmatprep.subr.bf16.mxu0 0
        %1833 = vmatpush2.bf16.msra.mxu0 0
        %1834 = vmatprep.subr.bf16.mxu0 0
        %1835 = vmatpush2.bf16.msra.mxu0 0
        %1836 = vmatprep.subr.bf16.mxu0 0
        %1837 = vmatpush2.bf16.msra.mxu0 0
        %1838 = vmatprep.mubr.bf16.mxu0 0
        %1839 = vmatmul.mubr.bf16.gmra.mxu0 %v1804
        %v1840 = vpop.f32.mrf.mxu0
        %v1841 = vadd.f32 %v1361, %v1840
        %v1842 = vpop.f32.mrf.mxu0
        %v1843 = vadd.f32 %v1361, %v1842
        %v1844 = vpop.f32.mrf.mxu0
        %v1845 = vpop.f32.mrf.mxu0
        %1846 = vdwg.mxu0
        %v1847 = vsub.f32 0.0, %v1841
        %v1848 = vsub.f32 0.0, %v1843
        %v1849 = vmul.f32 %v1847, 1.442695
        %v1850 = vpow.pop %v1849
        %v1851 = vmul.f32 %v1848, 1.442695
        %v1852 = vpow.pop %v1851
        %v1853 = vadd.f32 %v1850, 1.0
        %v1854 = vadd.f32 %v1852, 1.0
        %v1855 = vrcp.pop %v1853
        %v1856 = vrcp.pop %v1854
        %v1857 = vmul.f32 %v1841, %v1855
        %v1858 = vmul.f32 %v1843, %v1856
        %s1859 = scalar_lea.vmem %s523, 32 [#allocation15]
        %1860 = vst [vmem:[%s1859] sm:$0xff] %v1857
        %1861 = vst [vmem:[%s1859 + $0x8] sm:$0xff] %v1858
        %1862 = vrot.lane.b32.xlu0 %v1173, 111
        %v1863 = vpop.permute.xlu0 %1862
        %1864 = vrot.lane.b32.xlu0 %v1174, 111
        %v1865 = vpop.permute.xlu0 %1864
        %1866 = vrot.lane.b32.xlu0 %v1175, 111
        %v1867 = vpop.permute.xlu0 %1866
        %1868 = vrot.lane.b32.xlu0 %v1176, 111
        %v1869 = vpop.permute.xlu0 %1868
        %v1870 = vsel %vm934, %v1863, %v1865
        %v1871 = vsel %vm934, %v1867, %v1869
        %v1878 = vsel %vm934, %v1865, %v1863
        %v1879 = vsel %vm934, %v1869, %v1867
        %v1880 = vld [vmem:[%s940] sm:$0x3]
        %v1882 = vlaneseq
        %v1883 = vshrl.u32 %v1882, 7
        %v1884 = vsub.s32 0, %v1883
        %v1885 = vrot.slane %v1880, %v1884
        %v1886 = vlaneseq
        %v1887 = vshrl.u32 %v1886, 7
        %v1888 = vsub.s32 1, %v1887
        %v1889 = vrot.slane %v1880, %v1888
        %v1892 = vmul.f32 %v1870, %v1885
        %v1893 = vmul.f32 %v1878, %v1889
        %v1894 = vmul.f32 %v1871, %v1885
        %v1895 = vmul.f32 %v1879, %v1889
        %v1896 = vpack.c.bf16 %v1894, %v1892
        %v1897 = vpack.c.bf16 %v1895, %v1893
        %v1900 = vunpack.c.l.b16 %v1896
        %v1901 = vunpack.c.l.b16 %v1897
        %v1902 = vunpack.c.h.b16 %v1896
        %v1903 = vunpack.c.h.b16 %v1897
        %v1904 = vpack.c.b16 %v1901, %v1900
        %v1905 = vpack.c.b16 %v1903, %v1902
        %1908 = vst [vmem:[#allocation5] sm:$0xff] %v1904
        %1909 = vst [vmem:[#allocation5 + $0x8] sm:$0x33] %v1905
        %v1910 = vrot.slane %v1703, 6
        %v1911 = vrot.slane %v1910, 4
        %v1912 = vrot.slane %v1704, 6
        %v1913 = vsel %vm1242, %v1911, %v1912
        %1916 = vst [vmem:[#allocation5 + $0x8] sm:$0xcc] %v1910
        %1917 = vst [vmem:[#allocation5 + $0x10] sm:$0xff] %v1913
        %1918 = vst [vmem:[#allocation5 + $0x18] sm:$0xff] %v1494
        %1919 = vst [vmem:[#allocation5 + $0x20] sm:$0x33] %v1495
        %1920 = vst [vmem:[#allocation5 + $0x20] sm:$0xcc] %v1500
        %1921 = vst [vmem:[#allocation5 + $0x28] sm:$0xff] %v1503
        %s1922 = scalar_lea.vmem %s11, 12
        %v1923 = vld [vmem:[%s1922] sm:$0xf]
        %v1924 = vld [vmem:[#allocation5] sm:$0xff]
        %v1925 = vld [vmem:[#allocation5 + $0x8] sm:$0xff]
        %v1926 = vld [vmem:[#allocation5 + $0x10] sm:$0xff]
        %v1927 = vld [vmem:[#allocation5 + $0x18] sm:$0xff]
        %v1928 = vld [vmem:[#allocation5 + $0x20] sm:$0xff]
        %v1929 = vld [vmem:[#allocation5 + $0x28] sm:$0xff]
        %v1936 = vunpack.c.l.b16 %v1924
        %v1937 = vunpack.c.h.b16 %v1924
        %v1938 = vunpack.c.l.b16 %v1925
        %v1939 = vunpack.c.h.b16 %v1925
        %v1940 = vunpack.c.l.b16 %v1926
        %v1941 = vunpack.c.h.b16 %v1926
        %v1942 = vunpack.c.l.b16 %v1927
        %v1943 = vunpack.c.h.b16 %v1927
        %v1944 = vunpack.c.l.b16 %v1928
        %v1945 = vunpack.c.h.b16 %v1928
        %v1946 = vunpack.c.l.b16 %v1929
        %v1947 = vunpack.c.h.b16 %v1929
        %v1948 = vpack.c.b16 %v1938, %v1936
        %v1949 = vpack.c.b16 %v1939, %v1937
        %v1950 = vpack.c.b16 %v1942, %v1940
        %v1951 = vpack.c.b16 %v1943, %v1941
        %v1952 = vpack.c.b16 %v1946, %v1944
        %v1953 = vpack.c.b16 %v1947, %v1945
        %v1961 = vsel %vm1393, %v1923, 0
        %1963 = vmatprep.subr.bf16.mxu0 0
        %1964 = vmatpush1.bf16.msra.mxu0 0
        %1965 = vmatprep.subr.bf16.mxu0 0
        %1966 = vmatpush1.bf16.msra.mxu0 0
        %1967 = vmatprep.subr.bf16.mxu0 0
        %1968 = vmatpush1.bf16.msra.mxu0 0
        %1969 = vmatprep.subr.bf16.mxu0 0
        %1970 = vmatpush1.bf16.msra.mxu0 0
        %1971 = vmatprep.subr.bf16.mxu0 0
        %1972 = vmatpush1.bf16.msra.mxu0 0
        %1973 = vmatprep.subr.bf16.mxu0 %v1953
        %1974 = vmatpush1.bf16.msra.mxu0 %v1952
        %1975 = vmatprep.subr.bf16.mxu0 %v1951
        %1976 = vmatpush1.bf16.msra.mxu0 %v1950
        %1977 = vmatprep.subr.bf16.mxu0 %v1949
        %1978 = vmatpush1.bf16.msra.mxu0 %v1948
        %1979 = vmatprep.subr.bf16.mxu0 0
        %1980 = vmatpush2.bf16.msra.mxu0 0
        %1981 = vmatprep.subr.bf16.mxu0 0
        %1982 = vmatpush2.bf16.msra.mxu0 0
        %1983 = vmatprep.subr.bf16.mxu0 0
        %1984 = vmatpush2.bf16.msra.mxu0 0
        %1985 = vmatprep.subr.bf16.mxu0 0
        %1986 = vmatpush2.bf16.msra.mxu0 0
        %1987 = vmatprep.subr.bf16.mxu0 0
        %1988 = vmatpush2.bf16.msra.mxu0 0
        %1989 = vmatprep.subr.bf16.mxu0 0
        %1990 = vmatpush2.bf16.msra.mxu0 0
        %1991 = vmatprep.subr.bf16.mxu0 0
        %1992 = vmatpush2.bf16.msra.mxu0 0
        %1993 = vmatprep.subr.bf16.mxu0 0
        %1994 = vmatpush2.bf16.msra.mxu0 0
        %1995 = vmatprep.mubr.bf16.mxu0 0
        %1996 = vmatmul.mubr.bf16.gmra.mxu0 %v1961
        %v1997 = vpop.f32.mrf.mxu0
        %v1998 = vadd.f32 %v1361, %v1997
        %v1999 = vpop.f32.mrf.mxu0
        %v2000 = vadd.f32 %v1361, %v1999
        %v2001 = vpop.f32.mrf.mxu0
        %v2002 = vpop.f32.mrf.mxu0
        %2003 = vdwg.mxu0
        %v2004 = vsub.f32 0.0, %v1998
        %v2005 = vsub.f32 0.0, %v2000
        %v2006 = vmul.f32 %v2004, 1.442695
        %v2007 = vpow.pop %v2006
        %v2008 = vmul.f32 %v2005, 1.442695
        %v2009 = vpow.pop %v2008
        %v2010 = vadd.f32 %v2007, 1.0
        %v2011 = vadd.f32 %v2009, 1.0
        %v2012 = vrcp.pop %v2010
        %v2013 = vrcp.pop %v2011
        %v2014 = vmul.f32 %v1998, %v2012
        %v2015 = vmul.f32 %v2000, %v2013
        %s2016 = scalar_lea.vmem %s523, 48 [#allocation15]
        %2017 = vst [vmem:[%s2016] sm:$0xff] %v2014
        %2018 = vst [vmem:[%s2016 + $0x8] sm:$0xff] %v2015
        %s2019 = sand.u32 %s323, 1
        %s2020 = scalar_lea.sflag [#allocation8], %s2019
        %s2021 = sand.u32 %s323, 1
        %s2022 = smul.addr %s2021, 64
        %s2023 = scalar_lea.vmem [#allocation15], %s2022
        // Predicated region
        $region93: #{tpu_custom_call.1} parent=71 // pred_check
          %p2024 = pneg %p333
        $region94: #{tpu_custom_call.1} parent=71 // pred_check_branch
          %2026 = sbr.rel (%p2024) target = $region96
        $region95: #{tpu_custom_call.1} parent=71 // pred_region
          %s2028 = ssub.s32 1024, 1024
          %2029 = vsyncadd %s2020, %s2028
          %s2030 = smul.addr %s32, 8
          %s2031 = smul.addr %s2030, 128
          %s2032 = scalar_lea.hbm %s13, %s2031
          %s2033 = sshll.u32 %s2023, 4
          %s2034 = int_to_ptr.vmem [resolvable:$true] %s2033
          %2039 = dma.vmem_to_hbm [thread:$0]  %s2034, 1024, %s2032, %s2020, 256, 256, 16
        $region96: #{tpu_custom_call.1} parent=71 // pred_fallthru
          _
      $region72: #{tpu_custom_call.1} parent=5 // pred_fallthru
        _
      %p2040 = scmp.le.s32.totalorder 2, %s27
      // Predicated region
      $region97: #{tpu_custom_call.1} parent=5 // pred_check
        %p2041 = pneg %p2040
      $region98: #{tpu_custom_call.1} parent=5 // pred_check_branch
        %2043 = sbr.rel (%p2041) target = $region100
      $region99: #{tpu_custom_call.1} parent=5 // pred_region
        %s2044 = ssub.s32 %s27, 2
        // Predicated region
        $region101: #{tpu_custom_call.1} parent=99 // pred_check
          %p2045 = pneg %p339
        $region102: #{tpu_custom_call.1} parent=99 // pred_check_branch
          %2047 = sbr.rel (%p2045) target = $region104
        $region103: #{tpu_custom_call.1} parent=99 // pred_region
          %s2048 = sand.u32 %s324, 1
          %s2049 = scalar_lea.sflag [#allocation8], %s2048
          %s2050 = sand.u32 %s324, 1
          %s2051 = smul.addr %s2050, 64
          %s2052 = scalar_lea.vmem [#allocation15], %s2051
          %2053 = dma.done %s2049, 1024
        $region104: #{tpu_custom_call.1} parent=99 // pred_fallthru
          _
      $region100: #{tpu_custom_call.1} parent=5 // pred_fallthru
        _
    $region6: #{tpu_custom_call.1} parent=1 // loop_footer
      %s31 = sadd.s32 1, %s27
    $region7: #{tpu_custom_call.1} parent=1 // loop_footer_branch
      %26 = sbr.rel target = $region3
    $region8: #{tpu_custom_call.1} parent=1 // loop_exit
      _
    %2054 = vsyncpa [#allocation7], 1
    %s2055 = scalar_lea.sflag [#allocation7], 1
    %2056 = vsyncpa %s2055, 1
    %2057 = vsyncpa [#allocation10], 1
    %2058 = vsyncpa [#allocation13], 1
    %2059 = vsyncpa [#allocation8], 1
    %s2060 = scalar_lea.sflag [#allocation8], 1
    %2061 = vsyncpa %s2060, 1

</llo_original>
